<compile_context>
chip_gen: v5e
topology: v5e:2x2
jax: 0.10.0
libtpu: 0.0.40
codegen_flags: <defaults>
</compile_context>

<pallas_src>
import functools
import math

import jax
import jax.numpy as jnp
import numpy as np
from jax.experimental import pallas as pl
from jax.experimental.pallas import tpu as pltpu


# ---------------------------------------------------------------------------
# Fused kernel: dequantizer + dequantizationHead + sideHead + add +
#               restoreHead (1x1 conv) + PixelShuffle(2), one row tile.
# ---------------------------------------------------------------------------
def _fused_decoder_ps_kernel(s_ref, f_ref, wq_ref, ws_ref, wr_ref, br_ref,
                             sp_ref, o_ref, y_scr, *, tile_h, w, co):
    """Refs:
    s_ref : (m*k , tile_h*w)  channel-major soft codes (flat pixels on lanes)
    f_ref : (cf  , tile_h*w)  channel-major former-level features
    wq_ref: (c   , m*k)       fused (codebook @ dequantizationHead) weight^T
    ws_ref: (c   , cf)        sideHead weight^T
    wr_ref: (4*co, c)         restoreHead weight^T, rows ordered (i, j, c_o)
    br_ref: (4*co, 1)         f32 bias: restore bias + wr^T @ (b1 + bs)
    sp_ref: (2, w, 2*w)       0/1 spread matrices: sp[j][x, 2*x + j] = 1
    o_ref : (co, tile_h, 4*w) output rows; lane index = i*2w + 2x + j
    y_scr : (4*co, tile_h*w)  VMEM scratch for the pre-shuffle restore output
    """
    # Whole-tile, lane-dense MXU work (f32 accumulation).
    x = (jnp.dot(wq_ref[...], s_ref[...], preferred_element_type=jnp.float32)
         + jnp.dot(ws_ref[...], f_ref[...], preferred_element_type=jnp.float32))
    y = (jnp.dot(wr_ref[...], x.astype(wr_ref.dtype),
                 preferred_element_type=jnp.float32) + br_ref[...])
    y_scr[...] = y.astype(y_scr.dtype)

    # Per-row pixel shuffle (static unroll; tile_h is bounded by the wrapper).
    # j-interleave = matmul with tiny 0/1 spread matrices (MXU is idle here),
    # i-interleave = lane concatenation.  All work is hidden under HBM DMAs.
    for ty in range(tile_h):
        yrow = y_scr[:, ty * w:(ty + 1) * w]                      # (4*co, w)
        halves = []
        for i in (0, 1):
            y_even = yrow[(2 * i) * co:(2 * i + 1) * co, :]       # j = 0
            y_odd = yrow[(2 * i + 1) * co:(2 * i + 2) * co, :]    # j = 1
            halves.append(
                jnp.dot(y_even, sp_ref[0], preferred_element_type=jnp.float32)
                + jnp.dot(y_odd, sp_ref[1], preferred_element_type=jnp.float32))
        o_ref[:, ty, :] = jnp.concatenate(halves, axis=-1).astype(o_ref.dtype)


# ---------------------------------------------------------------------------
# Tile-size heuristic (all static Python ints at trace time).
# ---------------------------------------------------------------------------
def _pick_tile_h(n, h, w, per_row_bytes, *, target_px=8192,
                 vmem_budget_bytes=20 << 20, max_unroll_rows=64,
                 min_grid_steps=16, min_px_per_step=2048):
    """Rows of the (h, w) plane per grid step.

    Legality ((8,128) block rule): tile_h == h, OR
    (tile_h % 8 == 0 and (tile_h * w) % 128 == 0).
    """
    L = max(8, 128 // math.gcd(w, 128))     # legal granularity when tile_h < h
    cap = min(h,
              max_unroll_rows,
              max(1, vmem_budget_bytes // max(per_row_bytes, 1)),
              max(1, target_px // w))
    if cap >= h or L >= h:
        tile_h = h
    else:
        tile_h = max(L, (cap // L) * L)

    def steps(t):
        return n * ((h + t - 1) // t)

    # Prefer enough grid steps for pipelining and v7x 2-TC load balance, but
    # never drop below ~min_px_per_step pixels/step (per-step overhead).
    while (tile_h < h and tile_h > L and steps(tile_h) < min_grid_steps
           and (tile_h - L) * w >= min_px_per_step):
        tile_h -= L

    if tile_h != h and (tile_h % 8 != 0 or (tile_h * w) % 128 != 0):
        tile_h = h                          # full-height block is always legal
    return tile_h


# ---------------------------------------------------------------------------
# Full _quantizerDecoder.forward
# ---------------------------------------------------------------------------
@functools.partial(jax.jit,
                   static_argnames=("io_dtype", "sample_layout", "target_px"))
def quantizer_decoder_forward(sample, former_nchw, codebook, params, *,
                              io_dtype=jnp.bfloat16, sample_layout="nmhwk",
                              target_px=8192):
    """sample: soft codes, layout "nmhwk" -> [n, m, h, w, k] (PyTorch native)
    or "nmkhw" -> [n, m, k, h, w] (producer-friendly, avoids an HBM transpose).
    former_nchw: [n, Cf, h, w]; codebook: [m, k, d].
    Returns NCHW output [n, Co, 2h, 2w]."""
    io_dt = jnp.dtype(io_dtype)

    if sample_layout == "nmhwk":
        n, m, h, w, k = sample.shape
        # TODO(synk): have the upstream quantizer emit [n, m, k, h, w] so this
        # full-HBM transpose of the largest input disappears (use "nmkhw").
        sample_nmkhw = sample.transpose(0, 1, 4, 2, 3)
    elif sample_layout == "nmkhw":
        n, m, k, h, w = sample.shape
        sample_nmkhw = sample
    else:
        raise ValueError(f"unknown sample_layout: {sample_layout!r}")

    d = codebook.shape[-1]
    cf = former_nchw.shape[1]
    c = params["w1"].shape[-1]
    co4 = params["wr"].shape[-1]
    co = co4 // 4
    hw = h * w

    # ---- XLA-side weight prep (tiny, f32) -------------------------------
    # Fused dequantizer + dequantizationHead: Wf[m,k,c] = codebook[m] @ W1_m.
    w1_md = params["w1"].reshape(m, d, c).astype(jnp.float32)
    wf = jnp.einsum("mkd,mdc->mkc", codebook.astype(jnp.float32), w1_md)
    wq_t = wf.reshape(m * k, c).T                                   # (c, m*k)
    ws_t = params["ws"].T.astype(jnp.float32)                       # (c, cf)

    # Restore weight transposed, rows re-ordered to (i, j, c_o); (b1+bs)
    # folded through it into the restore bias (kept in f32).
    wr_t = params["wr"].T.astype(jnp.float32)                       # (co4, c)
    xb = (params["b1"] + params["bs"]).reshape(c).astype(jnp.float32)
    br_fold = params["br"].reshape(co4).astype(jnp.float32) + wr_t @ xb
    wrc = wr_t.reshape(co, 2, 2, c).transpose(1, 2, 0, 3).reshape(co4, c)
    brc = br_fold.reshape(co, 2, 2).transpose(1, 2, 0).reshape(co4, 1)

    # Spread (column-interleave) matrices: sp[j][x, 2x+j] = 1.
    lane = jnp.arange(2 * w)
    xpos = jnp.arange(w)
    sp = jnp.stack(
        [(lane[None, :] == 2 * xpos[:, None] + j) for j in (0, 1)],
        axis=0).astype(io_dt)                                       # (2, w, 2w)

    # ---- Channel-major activations (lane dim = pixels), free reshapes ----
    sample_cm = sample_nmkhw.reshape(n, m * k, hw).astype(io_dt)
    former_cm = former_nchw.reshape(n, cf, hw).astype(io_dt)
    wq_t, ws_t, wrc = (a.astype(io_dt) for a in (wq_t, ws_t, wrc))

    # ---- Tile over image rows --------------------------------------------
    ib = io_dt.itemsize
    per_row_bytes = w * ((m * k + cf) * ib * 2      # double-buffered inputs
                         + 4 * co * ib * 2          # double-buffered output
                         + 4 * co * ib)             # y scratch (single buffer)
    tile_h = _pick_tile_h(n, h, w, per_row_bytes, target_px=target_px)
    tile_px = tile_h * w
    grid = (n, pl.cdiv(h, tile_h))

    kernel = functools.partial(_fused_decoder_ps_kernel,
                               tile_h=tile_h, w=w, co=co)

    out4 = pl.pallas_call(
        kernel,
        out_shape=jax.ShapeDtypeStruct((n, co, h, 4 * w), io_dt),
        grid=grid,
        in_specs=[
            pl.BlockSpec((pl.Squeezed(), m * k, tile_px), lambda b, r: (b, 0, r)),
            pl.BlockSpec((pl.Squeezed(), cf, tile_px), lambda b, r: (b, 0, r)),
            pl.BlockSpec((c, m * k), lambda b, r: (0, 0)),
            pl.BlockSpec((c, cf), lambda b, r: (0, 0)),
            pl.BlockSpec((co4, c), lambda b, r: (0, 0)),
            pl.BlockSpec((co4, 1), lambda b, r: (0, 0)),
            pl.BlockSpec((2, w, 2 * w), lambda b, r: (0, 0, 0)),
        ],
        out_specs=pl.BlockSpec((pl.Squeezed(), co, tile_h, 4 * w),
                               lambda b, r: (b, 0, r, 0)),
        scratch_shapes=[pltpu.VMEM((co4, tile_px), io_dt)],
        compiler_params=pltpu.CompilerParams(
            dimension_semantics=("parallel", "parallel")),
    )(sample_cm, former_cm, wq_t, ws_t, wrc, brc, sp)

    # Pure view: (n, co, h, 4w) row-major == (n, co, 2h, 2w) row-major.
    return out4.reshape(n, co, 2 * h, 2 * w)


# ---------------------------------------------------------------------------
# Pure-JAX reference (mirrors the PyTorch semantics) for correctness check
# ---------------------------------------------------------------------------
def reference_forward(sample, former_nchw, codebook, params):
    n, m, h, w, k = sample.shape
    d = codebook.shape[-1]
    left = sample.reshape(n * m, h * w, k)
    right = jnp.broadcast_to(codebook[None], (n, m, k, d)).reshape(n * m, k, d)
    res = jnp.einsum("bpk,bkd->bpd", left, right)
    deq = res.reshape(n, m, h, w, d).transpose(0, 1, 4, 2, 3).reshape(n, m * d, h, w)

    def conv1x1(x_nchw, wgt, bias):
        return (jnp.einsum("nchw,co->nohw", x_nchw, wgt)
                + bias[0][None, :, None, None])

    q = conv1x1(deq, params["w1"], params["b1"])
    side = conv1x1(former_nchw, params["ws"], params["bs"])
    x = q + side
    y = conv1x1(x, params["wr"], params["br"])
    co = y.shape[1] // 4
    y = y.reshape(n, co, 2, 2, h, w).transpose(0, 1, 4, 2, 5, 3)
    return y.reshape(n, co, 2 * h, 2 * w)


if __name__ == "__main__":
    # Small shapes: n=2 images, m=2 codebooks, k=8 entries, d=16 dims,
    # spatial h=w=8 (the "H/2, W/2" level), former-level channels Cf=16,
    # hidden C=32, restored output channels Co=8 at 16x16.
    n, m, k, d = 2, 2, 8, 16
    h = w = 8
    cf, c, co = 16, 32, 8

    key = jax.random.PRNGKey(0)
    ks = jax.random.split(key, 10)

    codebook = jax.random.normal(ks[0], (m, k, d), jnp.float32) * 0.5
    params = {
        "w1": jax.random.normal(ks[1], (m * d, c), jnp.float32) * 0.1,
        "b1": jax.random.normal(ks[2], (1, c), jnp.float32) * 0.01,
        "ws": jax.random.normal(ks[3], (cf, c), jnp.float32) * 0.1,
        "bs": jax.random.normal(ks[4], (1, c), jnp.float32) * 0.01,
        "wr": jax.random.normal(ks[5], (c, co * 4), jnp.float32) * 0.1,
        "br": jax.random.normal(ks[6], (1, co * 4), jnp.float32) * 0.01,
    }
    sample = jax.nn.softmax(
        jax.random.normal(ks[7], (n, m, h, w, k), jnp.float32), axis=-1)
    former = jax.random.normal(ks[8], (n, cf, h, w), jnp.float32)

    ref = reference_forward(sample, former, codebook, params)

    # f32 I/O path: strict check (small diff from fused-weight / bias-fold
    # reassociation only).
    out_f32 = quantizer_decoder_forward(sample, former, codebook, params,
                                        io_dtype=jnp.float32)
    out_f32 = jax.block_until_ready(out_f32)
    assert out_f32.shape == (n, co, 2 * h, 2 * w), out_f32.shape
    np.testing.assert_allclose(np.asarray(out_f32), np.asarray(ref),
                               rtol=1e-4, atol=1e-4)

    # Producer-friendly [n, m, k, h, w] layout (no XLA-side sample transpose).
    out_kmaj = quantizer_decoder_forward(sample.transpose(0, 1, 4, 2, 3),
                                         former, codebook, params,
                                         io_dtype=jnp.float32,
                                         sample_layout="nmkhw")
    out_kmaj = jax.block_until_ready(out_kmaj)
    np.testing.assert_allclose(np.asarray(out_kmaj), np.asarray(ref),
                               rtol=1e-4, atol=1e-4)

    # Production default: bf16 I/O (half HBM traffic), f32 accumulation.
    out_bf16 = quantizer_decoder_forward(sample, former, codebook, params)
    out_bf16 = jax.block_until_ready(out_bf16)
    assert out_bf16.dtype == jnp.bfloat16
    np.testing.assert_allclose(np.asarray(out_bf16.astype(jnp.float32)),
                               np.asarray(ref), rtol=5e-2, atol=5e-2)

    print("KERNEL_OK")
</pallas_src>

<mosaic_0001>
module attributes {stable_mosaic.version = 11 : i64} {
  func.func @_fused_decoder_ps_kernel(%arg0: i32, %arg1: i32, %arg2: memref<1x16x64xf32, #tpu.memory_space<vmem>>, %arg3: memref<1x16x64xf32, #tpu.memory_space<vmem>>, %arg4: memref<32x16xf32, #tpu.memory_space<vmem>>, %arg5: memref<32x16xf32, #tpu.memory_space<vmem>>, %arg6: memref<32x32xf32, #tpu.memory_space<vmem>>, %arg7: memref<32x1xf32, #tpu.memory_space<vmem>>, %arg8: memref<2x8x16xf32, #tpu.memory_space<vmem>>, %arg9: memref<1x8x8x32xf32, #tpu.memory_space<vmem>>, %arg10: memref<32x64xf32, #tpu.memory_space<vmem>>) attributes {dimension_semantics = [#tpu.dimension_semantics<parallel>, #tpu.dimension_semantics<parallel>], iteration_bounds = array<i64: 2, 1>, scalar_prefetch = 0 : i64, scratch_operands = 1 : i64, tpu.core_type = #tpu.core_type<tc>, window_params = [{transform_indices = @transform_0, window_bounds = array<i64: 1, 16, 64>}, {transform_indices = @transform_1, window_bounds = array<i64: 1, 16, 64>}, {pipeline_mode = #tpu.pipeline_mode<synchronous>, transform_indices = @transform_2, window_bounds = array<i64: 32, 16>}, {pipeline_mode = #tpu.pipeline_mode<synchronous>, transform_indices = @transform_3, window_bounds = array<i64: 32, 16>}, {pipeline_mode = #tpu.pipeline_mode<synchronous>, transform_indices = @transform_4, window_bounds = array<i64: 32, 32>}, {pipeline_mode = #tpu.pipeline_mode<synchronous>, transform_indices = @transform_5, window_bounds = array<i64: 32, 1>}, {pipeline_mode = #tpu.pipeline_mode<synchronous>, transform_indices = @transform_6, window_bounds = array<i64: 2, 8, 16>}, {transform_indices = @transform_7, window_bounds = array<i64: 1, 8, 8, 32>}]} {
    %c0 = arith.constant 0 : index
    %c0_0 = arith.constant 0 : index
    %0 = vector.load %arg4[%c0, %c0_0] : memref<32x16xf32, #tpu.memory_space<vmem>>, vector<32x16xf32>
    %c0_1 = arith.constant 0 : index
    %c0_2 = arith.constant 0 : index
    %c0_3 = arith.constant 0 : index
    %1 = vector.load %arg2[%c0_1, %c0_2, %c0_3] : memref<1x16x64xf32, #tpu.memory_space<vmem>>, vector<1x16x64xf32>
    %2 = vector.shape_cast %1 : vector<1x16x64xf32> to vector<16x64xf32>
    %cst = arith.constant dense<0.000000e+00> : vector<32x64xf32>
    %3 = tpu.matmul %0, %2, %cst {dimension_numbers = #tpu.dot_dimension_numbers<[1], [0], [0], [1], [0, 0, 1, 1], [], []>} : vector<32x16xf32>, vector<16x64xf32>, vector<32x64xf32> -> vector<32x64xf32>
    %c0_4 = arith.constant 0 : index
    %c0_5 = arith.constant 0 : index
    %4 = vector.load %arg5[%c0_4, %c0_5] : memref<32x16xf32, #tpu.memory_space<vmem>>, vector<32x16xf32>
    %c0_6 = arith.constant 0 : index
    %c0_7 = arith.constant 0 : index
    %c0_8 = arith.constant 0 : index
    %5 = vector.load %arg3[%c0_6, %c0_7, %c0_8] : memref<1x16x64xf32, #tpu.memory_space<vmem>>, vector<1x16x64xf32>
    %6 = vector.shape_cast %5 : vector<1x16x64xf32> to vector<16x64xf32>
    %cst_9 = arith.constant dense<0.000000e+00> : vector<32x64xf32>
    %7 = tpu.matmul %4, %6, %cst_9 {dimension_numbers = #tpu.dot_dimension_numbers<[1], [0], [0], [1], [0, 0, 1, 1], [], []>} : vector<32x16xf32>, vector<16x64xf32>, vector<32x64xf32> -> vector<32x64xf32>
    %8 = arith.addf %3, %7 : vector<32x64xf32>
    %c0_10 = arith.constant 0 : index
    %c0_11 = arith.constant 0 : index
    %9 = vector.load %arg6[%c0_10, %c0_11] : memref<32x32xf32, #tpu.memory_space<vmem>>, vector<32x32xf32>
    %cst_12 = arith.constant dense<0.000000e+00> : vector<32x64xf32>
    %10 = tpu.matmul %9, %8, %cst_12 {dimension_numbers = #tpu.dot_dimension_numbers<[1], [0], [0], [1], [0, 0, 1, 1], [], []>} : vector<32x32xf32>, vector<32x64xf32>, vector<32x64xf32> -> vector<32x64xf32>
    %c0_13 = arith.constant 0 : index
    %c0_14 = arith.constant 0 : index
    %11 = vector.load %arg7[%c0_13, %c0_14] : memref<32x1xf32, #tpu.memory_space<vmem>>, vector<32x1xf32>
    %12 = vector.broadcast %11 : vector<32x1xf32> to vector<32x64xf32>
    %13 = arith.addf %10, %12 : vector<32x64xf32>
    %c0_15 = arith.constant 0 : index
    %c0_16 = arith.constant 0 : index
    %14 = vector.load %arg10[%c0_15, %c0_16] : memref<32x64xf32, #tpu.memory_space<vmem>>, vector<32x64xf32>
    tpu.vector_store %arg10[%c0_15, %c0_16], %13 {strides = array<i32>} : memref<32x64xf32, #tpu.memory_space<vmem>>, vector<32x64xf32>,
    %c0_17 = arith.constant 0 : index
    %c0_18 = arith.constant 0 : index
    %15 = vector.load %arg10[%c0_17, %c0_18] : memref<32x64xf32, #tpu.memory_space<vmem>>, vector<32x8xf32>
    %16 = vector.extract_strided_slice %15 {offsets = [0, 0], sizes = [8, 8], strides = [1, 1]} : vector<32x8xf32> to vector<8x8xf32>
    %17 = vector.extract_strided_slice %15 {offsets = [8, 0], sizes = [8, 8], strides = [1, 1]} : vector<32x8xf32> to vector<8x8xf32>
    %c0_19 = arith.constant 0 : index
    %c0_20 = arith.constant 0 : index
    %c0_21 = arith.constant 0 : index
    %18 = vector.load %arg8[%c0_19, %c0_20, %c0_21] : memref<2x8x16xf32, #tpu.memory_space<vmem>>, vector<1x8x16xf32>
    %19 = vector.shape_cast %18 : vector<1x8x16xf32> to vector<8x16xf32>
    %cst_22 = arith.constant dense<0.000000e+00> : vector<8x16xf32>
    %20 = tpu.matmul %16, %19, %cst_22 {dimension_numbers = #tpu.dot_dimension_numbers<[1], [0], [0], [1], [0, 0, 1, 1], [], []>} : vector<8x8xf32>, vector<8x16xf32>, vector<8x16xf32> -> vector<8x16xf32>
    %c1 = arith.constant 1 : index
    %c0_23 = arith.constant 0 : index
    %c0_24 = arith.constant 0 : index
    %21 = vector.load %arg8[%c1, %c0_23, %c0_24] : memref<2x8x16xf32, #tpu.memory_space<vmem>>, vector<1x8x16xf32>
    %22 = vector.shape_cast %21 : vector<1x8x16xf32> to vector<8x16xf32>
    %cst_25 = arith.constant dense<0.000000e+00> : vector<8x16xf32>
    %23 = tpu.matmul %17, %22, %cst_25 {dimension_numbers = #tpu.dot_dimension_numbers<[1], [0], [0], [1], [0, 0, 1, 1], [], []>} : vector<8x8xf32>, vector<8x16xf32>, vector<8x16xf32> -> vector<8x16xf32>
    %24 = arith.addf %20, %23 : vector<8x16xf32>
    %25 = vector.extract_strided_slice %15 {offsets = [16, 0], sizes = [8, 8], strides = [1, 1]} : vector<32x8xf32> to vector<8x8xf32>
    %26 = vector.extract_strided_slice %15 {offsets = [24, 0], sizes = [8, 8], strides = [1, 1]} : vector<32x8xf32> to vector<8x8xf32>
    %c0_26 = arith.constant 0 : index
    %c0_27 = arith.constant 0 : index
    %c0_28 = arith.constant 0 : index
    %27 = vector.load %arg8[%c0_26, %c0_27, %c0_28] : memref<2x8x16xf32, #tpu.memory_space<vmem>>, vector<1x8x16xf32>
    %28 = vector.shape_cast %27 : vector<1x8x16xf32> to vector<8x16xf32>
    %cst_29 = arith.constant dense<0.000000e+00> : vector<8x16xf32>
    %29 = tpu.matmul %25, %28, %cst_29 {dimension_numbers = #tpu.dot_dimension_numbers<[1], [0], [0], [1], [0, 0, 1, 1], [], []>} : vector<8x8xf32>, vector<8x16xf32>, vector<8x16xf32> -> vector<8x16xf32>
    %c1_30 = arith.constant 1 : index
    %c0_31 = arith.constant 0 : index
    %c0_32 = arith.constant 0 : index
    %30 = vector.load %arg8[%c1_30, %c0_31, %c0_32] : memref<2x8x16xf32, #tpu.memory_space<vmem>>, vector<1x8x16xf32>
    %31 = vector.shape_cast %30 : vector<1x8x16xf32> to vector<8x16xf32>
    %cst_33 = arith.constant dense<0.000000e+00> : vector<8x16xf32>
    %32 = tpu.matmul %26, %31, %cst_33 {dimension_numbers = #tpu.dot_dimension_numbers<[1], [0], [0], [1], [0, 0, 1, 1], [], []>} : vector<8x8xf32>, vector<8x16xf32>, vector<8x16xf32> -> vector<8x16xf32>
    %33 = arith.addf %29, %32 : vector<8x16xf32>
    %34 = tpu.concatenate %24, %33 in 1 : vector<8x16xf32>, vector<8x16xf32> -> vector<8x32xf32>
    %c0_34 = arith.constant 0 : index
    %c0_35 = arith.constant 0 : index
    %c0_36 = arith.constant 0 : index
    %c0_37 = arith.constant 0 : index
    %35 = vector.load %arg9[%c0_34, %c0_35, %c0_36, %c0_37] : memref<1x8x8x32xf32, #tpu.memory_space<vmem>>, vector<1x8x1x32xf32>
    %36 = vector.shape_cast %35 : vector<1x8x1x32xf32> to vector<8x32xf32>
    %37 = vector.shape_cast %34 : vector<8x32xf32> to vector<1x8x1x32xf32>
    tpu.vector_store %arg9[%c0_34, %c0_35, %c0_36, %c0_37], %37 {strides = array<i32>} : memref<1x8x8x32xf32, #tpu.memory_space<vmem>>, vector<1x8x1x32xf32>,
    %c0_38 = arith.constant 0 : index
    %c8 = arith.constant 8 : index
    %38 = vector.load %arg10[%c0_38, %c8] : memref<32x64xf32, #tpu.memory_space<vmem>>, vector<32x8xf32>
    %39 = vector.extract_strided_slice %38 {offsets = [0, 0], sizes = [8, 8], strides = [1, 1]} : vector<32x8xf32> to vector<8x8xf32>
    %40 = vector.extract_strided_slice %38 {offsets = [8, 0], sizes = [8, 8], strides = [1, 1]} : vector<32x8xf32> to vector<8x8xf32>
    %c0_39 = arith.constant 0 : index
    %c0_40 = arith.constant 0 : index
    %c0_41 = arith.constant 0 : index
    %41 = vector.load %arg8[%c0_39, %c0_40, %c0_41] : memref<2x8x16xf32, #tpu.memory_space<vmem>>, vector<1x8x16xf32>
    %42 = vector.shape_cast %41 : vector<1x8x16xf32> to vector<8x16xf32>
    %cst_42 = arith.constant dense<0.000000e+00> : vector<8x16xf32>
    %43 = tpu.matmul %39, %42, %cst_42 {dimension_numbers = #tpu.dot_dimension_numbers<[1], [0], [0], [1], [0, 0, 1, 1], [], []>} : vector<8x8xf32>, vector<8x16xf32>, vector<8x16xf32> -> vector<8x16xf32>
    %c1_43 = arith.constant 1 : index
    %c0_44 = arith.constant 0 : index
    %c0_45 = arith.constant 0 : index
    %44 = vector.load %arg8[%c1_43, %c0_44, %c0_45] : memref<2x8x16xf32, #tpu.memory_space<vmem>>, vector<1x8x16xf32>
    %45 = vector.shape_cast %44 : vector<1x8x16xf32> to vector<8x16xf32>
    %cst_46 = arith.constant dense<0.000000e+00> : vector<8x16xf32>
    %46 = tpu.matmul %40, %45, %cst_46 {dimension_numbers = #tpu.dot_dimension_numbers<[1], [0], [0], [1], [0, 0, 1, 1], [], []>} : vector<8x8xf32>, vector<8x16xf32>, vector<8x16xf32> -> vector<8x16xf32>
    %47 = arith.addf %43, %46 : vector<8x16xf32>
    %48 = vector.extract_strided_slice %38 {offsets = [16, 0], sizes = [8, 8], strides = [1, 1]} : vector<32x8xf32> to vector<8x8xf32>
    %49 = vector.extract_strided_slice %38 {offsets = [24, 0], sizes = [8, 8], strides = [1, 1]} : vector<32x8xf32> to vector<8x8xf32>
    %c0_47 = arith.constant 0 : index
    %c0_48 = arith.constant 0 : index
    %c0_49 = arith.constant 0 : index
    %50 = vector.load %arg8[%c0_47, %c0_48, %c0_49] : memref<2x8x16xf32, #tpu.memory_space<vmem>>, vector<1x8x16xf32>
    %51 = vector.shape_cast %50 : vector<1x8x16xf32> to vector<8x16xf32>
    %cst_50 = arith.constant dense<0.000000e+00> : vector<8x16xf32>
    %52 = tpu.matmul %48, %51, %cst_50 {dimension_numbers = #tpu.dot_dimension_numbers<[1], [0], [0], [1], [0, 0, 1, 1], [], []>} : vector<8x8xf32>, vector<8x16xf32>, vector<8x16xf32> -> vector<8x16xf32>
    %c1_51 = arith.constant 1 : index
    %c0_52 = arith.constant 0 : index
    %c0_53 = arith.constant 0 : index
    %53 = vector.load %arg8[%c1_51, %c0_52, %c0_53] : memref<2x8x16xf32, #tpu.memory_space<vmem>>, vector<1x8x16xf32>
    %54 = vector.shape_cast %53 : vector<1x8x16xf32> to vector<8x16xf32>
    %cst_54 = arith.constant dense<0.000000e+00> : vector<8x16xf32>
    %55 = tpu.matmul %49, %54, %cst_54 {dimension_numbers = #tpu.dot_dimension_numbers<[1], [0], [0], [1], [0, 0, 1, 1], [], []>} : vector<8x8xf32>, vector<8x16xf32>, vector<8x16xf32> -> vector<8x16xf32>
    %56 = arith.addf %52, %55 : vector<8x16xf32>
    %57 = tpu.concatenate %47, %56 in 1 : vector<8x16xf32>, vector<8x16xf32> -> vector<8x32xf32>
    %c0_55 = arith.constant 0 : index
    %c0_56 = arith.constant 0 : index
    %c1_57 = arith.constant 1 : index
    %c0_58 = arith.constant 0 : index
    %58 = vector.load %arg9[%c0_55, %c0_56, %c1_57, %c0_58] : memref<1x8x8x32xf32, #tpu.memory_space<vmem>>, vector<1x8x1x32xf32>
    %59 = vector.shape_cast %58 : vector<1x8x1x32xf32> to vector<8x32xf32>
    %60 = vector.shape_cast %57 : vector<8x32xf32> to vector<1x8x1x32xf32>
    tpu.vector_store %arg9[%c0_55, %c0_56, %c1_57, %c0_58], %60 {strides = array<i32>} : memref<1x8x8x32xf32, #tpu.memory_space<vmem>>, vector<1x8x1x32xf32>,
    %c0_59 = arith.constant 0 : index
    %c16 = arith.constant 16 : index
    %61 = vector.load %arg10[%c0_59, %c16] : memref<32x64xf32, #tpu.memory_space<vmem>>, vector<32x8xf32>
    %62 = vector.extract_strided_slice %61 {offsets = [0, 0], sizes = [8, 8], strides = [1, 1]} : vector<32x8xf32> to vector<8x8xf32>
    %63 = vector.extract_strided_slice %61 {offsets = [8, 0], sizes = [8, 8], strides = [1, 1]} : vector<32x8xf32> to vector<8x8xf32>
    %c0_60 = arith.constant 0 : index
    %c0_61 = arith.constant 0 : index
    %c0_62 = arith.constant 0 : index
    %64 = vector.load %arg8[%c0_60, %c0_61, %c0_62] : memref<2x8x16xf32, #tpu.memory_space<vmem>>, vector<1x8x16xf32>
    %65 = vector.shape_cast %64 : vector<1x8x16xf32> to vector<8x16xf32>
    %cst_63 = arith.constant dense<0.000000e+00> : vector<8x16xf32>
    %66 = tpu.matmul %62, %65, %cst_63 {dimension_numbers = #tpu.dot_dimension_numbers<[1], [0], [0], [1], [0, 0, 1, 1], [], []>} : vector<8x8xf32>, vector<8x16xf32>, vector<8x16xf32> -> vector<8x16xf32>
    %c1_64 = arith.constant 1 : index
    %c0_65 = arith.constant 0 : index
    %c0_66 = arith.constant 0 : index
    %67 = vector.load %arg8[%c1_64, %c0_65, %c0_66] : memref<2x8x16xf32, #tpu.memory_space<vmem>>, vector<1x8x16xf32>
    %68 = vector.shape_cast %67 : vector<1x8x16xf32> to vector<8x16xf32>
    %cst_67 = arith.constant dense<0.000000e+00> : vector<8x16xf32>
    %69 = tpu.matmul %63, %68, %cst_67 {dimension_numbers = #tpu.dot_dimension_numbers<[1], [0], [0], [1], [0, 0, 1, 1], [], []>} : vector<8x8xf32>, vector<8x16xf32>, vector<8x16xf32> -> vector<8x16xf32>
    %70 = arith.addf %66, %69 : vector<8x16xf32>
    %71 = vector.extract_strided_slice %61 {offsets = [16, 0], sizes = [8, 8], strides = [1, 1]} : vector<32x8xf32> to vector<8x8xf32>
    %72 = vector.extract_strided_slice %61 {offsets = [24, 0], sizes = [8, 8], strides = [1, 1]} : vector<32x8xf32> to vector<8x8xf32>
    %c0_68 = arith.constant 0 : index
    %c0_69 = arith.constant 0 : index
    %c0_70 = arith.constant 0 : index
    %73 = vector.load %arg8[%c0_68, %c0_69, %c0_70] : memref<2x8x16xf32, #tpu.memory_space<vmem>>, vector<1x8x16xf32>
    %74 = vector.shape_cast %73 : vector<1x8x16xf32> to vector<8x16xf32>
    %cst_71 = arith.constant dense<0.000000e+00> : vector<8x16xf32>
    %75 = tpu.matmul %71, %74, %cst_71 {dimension_numbers = #tpu.dot_dimension_numbers<[1], [0], [0], [1], [0, 0, 1, 1], [], []>} : vector<8x8xf32>, vector<8x16xf32>, vector<8x16xf32> -> vector<8x16xf32>
    %c1_72 = arith.constant 1 : index
    %c0_73 = arith.constant 0 : index
    %c0_74 = arith.constant 0 : index
    %76 = vector.load %arg8[%c1_72, %c0_73, %c0_74] : memref<2x8x16xf32, #tpu.memory_space<vmem>>, vector<1x8x16xf32>
    %77 = vector.shape_cast %76 : vector<1x8x16xf32> to vector<8x16xf32>
    %cst_75 = arith.constant dense<0.000000e+00> : vector<8x16xf32>
    %78 = tpu.matmul %72, %77, %cst_75 {dimension_numbers = #tpu.dot_dimension_numbers<[1], [0], [0], [1], [0, 0, 1, 1], [], []>} : vector<8x8xf32>, vector<8x16xf32>, vector<8x16xf32> -> vector<8x16xf32>
    %79 = arith.addf %75, %78 : vector<8x16xf32>
    %80 = tpu.concatenate %70, %79 in 1 : vector<8x16xf32>, vector<8x16xf32> -> vector<8x32xf32>
    %c0_76 = arith.constant 0 : index
    %c0_77 = arith.constant 0 : index
    %c2 = arith.constant 2 : index
    %c0_78 = arith.constant 0 : index
    %81 = vector.load %arg9[%c0_76, %c0_77, %c2, %c0_78] : memref<1x8x8x32xf32, #tpu.memory_space<vmem>>, vector<1x8x1x32xf32>
    %82 = vector.shape_cast %81 : vector<1x8x1x32xf32> to vector<8x32xf32>
    %83 = vector.shape_cast %80 : vector<8x32xf32> to vector<1x8x1x32xf32>
    tpu.vector_store %arg9[%c0_76, %c0_77, %c2, %c0_78], %83 {strides = array<i32>} : memref<1x8x8x32xf32, #tpu.memory_space<vmem>>, vector<1x8x1x32xf32>,
    %c0_79 = arith.constant 0 : index
    %c24 = arith.constant 24 : index
    %84 = vector.load %arg10[%c0_79, %c24] : memref<32x64xf32, #tpu.memory_space<vmem>>, vector<32x8xf32>
    %85 = vector.extract_strided_slice %84 {offsets = [0, 0], sizes = [8, 8], strides = [1, 1]} : vector<32x8xf32> to vector<8x8xf32>
    %86 = vector.extract_strided_slice %84 {offsets = [8, 0], sizes = [8, 8], strides = [1, 1]} : vector<32x8xf32> to vector<8x8xf32>
    %c0_80 = arith.constant 0 : index
    %c0_81 = arith.constant 0 : index
    %c0_82 = arith.constant 0 : index
    %87 = vector.load %arg8[%c0_80, %c0_81, %c0_82] : memref<2x8x16xf32, #tpu.memory_space<vmem>>, vector<1x8x16xf32>
    %88 = vector.shape_cast %87 : vector<1x8x16xf32> to vector<8x16xf32>
    %cst_83 = arith.constant dense<0.000000e+00> : vector<8x16xf32>
    %89 = tpu.matmul %85, %88, %cst_83 {dimension_numbers = #tpu.dot_dimension_numbers<[1], [0], [0], [1], [0, 0, 1, 1], [], []>} : vector<8x8xf32>, vector<8x16xf32>, vector<8x16xf32> -> vector<8x16xf32>
    %c1_84 = arith.constant 1 : index
    %c0_85 = arith.constant 0 : index
    %c0_86 = arith.constant 0 : index
    %90 = vector.load %arg8[%c1_84, %c0_85, %c0_86] : memref<2x8x16xf32, #tpu.memory_space<vmem>>, vector<1x8x16xf32>
    %91 = vector.shape_cast %90 : vector<1x8x16xf32> to vector<8x16xf32>
    %cst_87 = arith.constant dense<0.000000e+00> : vector<8x16xf32>
    %92 = tpu.matmul %86, %91, %cst_87 {dimension_numbers = #tpu.dot_dimension_numbers<[1], [0], [0], [1], [0, 0, 1, 1], [], []>} : vector<8x8xf32>, vector<8x16xf32>, vector<8x16xf32> -> vector<8x16xf32>
    %93 = arith.addf %89, %92 : vector<8x16xf32>
    %94 = vector.extract_strided_slice %84 {offsets = [16, 0], sizes = [8, 8], strides = [1, 1]} : vector<32x8xf32> to vector<8x8xf32>
    %95 = vector.extract_strided_slice %84 {offsets = [24, 0], sizes = [8, 8], strides = [1, 1]} : vector<32x8xf32> to vector<8x8xf32>
    %c0_88 = arith.constant 0 : index
    %c0_89 = arith.constant 0 : index
    %c0_90 = arith.constant 0 : index
    %96 = vector.load %arg8[%c0_88, %c0_89, %c0_90] : memref<2x8x16xf32, #tpu.memory_space<vmem>>, vector<1x8x16xf32>
    %97 = vector.shape_cast %96 : vector<1x8x16xf32> to vector<8x16xf32>
    %cst_91 = arith.constant dense<0.000000e+00> : vector<8x16xf32>
    %98 = tpu.matmul %94, %97, %cst_91 {dimension_numbers = #tpu.dot_dimension_numbers<[1], [0], [0], [1], [0, 0, 1, 1], [], []>} : vector<8x8xf32>, vector<8x16xf32>, vector<8x16xf32> -> vector<8x16xf32>
    %c1_92 = arith.constant 1 : index
    %c0_93 = arith.constant 0 : index
    %c0_94 = arith.constant 0 : index
    %99 = vector.load %arg8[%c1_92, %c0_93, %c0_94] : memref<2x8x16xf32, #tpu.memory_space<vmem>>, vector<1x8x16xf32>
    %100 = vector.shape_cast %99 : vector<1x8x16xf32> to vector<8x16xf32>
    %cst_95 = arith.constant dense<0.000000e+00> : vector<8x16xf32>
    %101 = tpu.matmul %95, %100, %cst_95 {dimension_numbers = #tpu.dot_dimension_numbers<[1], [0], [0], [1], [0, 0, 1, 1], [], []>} : vector<8x8xf32>, vector<8x16xf32>, vector<8x16xf32> -> vector<8x16xf32>
    %102 = arith.addf %98, %101 : vector<8x16xf32>
    %103 = tpu.concatenate %93, %102 in 1 : vector<8x16xf32>, vector<8x16xf32> -> vector<8x32xf32>
    %c0_96 = arith.constant 0 : index
    %c0_97 = arith.constant 0 : index
    %c3 = arith.constant 3 : index
    %c0_98 = arith.constant 0 : index
    %104 = vector.load %arg9[%c0_96, %c0_97, %c3, %c0_98] : memref<1x8x8x32xf32, #tpu.memory_space<vmem>>, vector<1x8x1x32xf32>
    %105 = vector.shape_cast %104 : vector<1x8x1x32xf32> to vector<8x32xf32>
    %106 = vector.shape_cast %103 : vector<8x32xf32> to vector<1x8x1x32xf32>
    tpu.vector_store %arg9[%c0_96, %c0_97, %c3, %c0_98], %106 {strides = array<i32>} : memref<1x8x8x32xf32, #tpu.memory_space<vmem>>, vector<1x8x1x32xf32>,
    %c0_99 = arith.constant 0 : index
    %c32 = arith.constant 32 : index
    %107 = vector.load %arg10[%c0_99, %c32] : memref<32x64xf32, #tpu.memory_space<vmem>>, vector<32x8xf32>
    %108 = vector.extract_strided_slice %107 {offsets = [0, 0], sizes = [8, 8], strides = [1, 1]} : vector<32x8xf32> to vector<8x8xf32>
    %109 = vector.extract_strided_slice %107 {offsets = [8, 0], sizes = [8, 8], strides = [1, 1]} : vector<32x8xf32> to vector<8x8xf32>
    %c0_100 = arith.constant 0 : index
    %c0_101 = arith.constant 0 : index
    %c0_102 = arith.constant 0 : index
    %110 = vector.load %arg8[%c0_100, %c0_101, %c0_102] : memref<2x8x16xf32, #tpu.memory_space<vmem>>, vector<1x8x16xf32>
    %111 = vector.shape_cast %110 : vector<1x8x16xf32> to vector<8x16xf32>
    %cst_103 = arith.constant dense<0.000000e+00> : vector<8x16xf32>
    %112 = tpu.matmul %108, %111, %cst_103 {dimension_numbers = #tpu.dot_dimension_numbers<[1], [0], [0], [1], [0, 0, 1, 1], [], []>} : vector<8x8xf32>, vector<8x16xf32>, vector<8x16xf32> -> vector<8x16xf32>
    %c1_104 = arith.constant 1 : index
    %c0_105 = arith.constant 0 : index
    %c0_106 = arith.constant 0 : index
    %113 = vector.load %arg8[%c1_104, %c0_105, %c0_106] : memref<2x8x16xf32, #tpu.memory_space<vmem>>, vector<1x8x16xf32>
    %114 = vector.shape_cast %113 : vector<1x8x16xf32> to vector<8x16xf32>
    %cst_107 = arith.constant dense<0.000000e+00> : vector<8x16xf32>
    %115 = tpu.matmul %109, %114, %cst_107 {dimension_numbers = #tpu.dot_dimension_numbers<[1], [0], [0], [1], [0, 0, 1, 1], [], []>} : vector<8x8xf32>, vector<8x16xf32>, vector<8x16xf32> -> vector<8x16xf32>
    %116 = arith.addf %112, %115 : vector<8x16xf32>
    %117 = vector.extract_strided_slice %107 {offsets = [16, 0], sizes = [8, 8], strides = [1, 1]} : vector<32x8xf32> to vector<8x8xf32>
    %118 = vector.extract_strided_slice %107 {offsets = [24, 0], sizes = [8, 8], strides = [1, 1]} : vector<32x8xf32> to vector<8x8xf32>
    %c0_108 = arith.constant 0 : index
    %c0_109 = arith.constant 0 : index
    %c0_110 = arith.constant 0 : index
    %119 = vector.load %arg8[%c0_108, %c0_109, %c0_110] : memref<2x8x16xf32, #tpu.memory_space<vmem>>, vector<1x8x16xf32>
    %120 = vector.shape_cast %119 : vector<1x8x16xf32> to vector<8x16xf32>
    %cst_111 = arith.constant dense<0.000000e+00> : vector<8x16xf32>
    %121 = tpu.matmul %117, %120, %cst_111 {dimension_numbers = #tpu.dot_dimension_numbers<[1], [0], [0], [1], [0, 0, 1, 1], [], []>} : vector<8x8xf32>, vector<8x16xf32>, vector<8x16xf32> -> vector<8x16xf32>
    %c1_112 = arith.constant 1 : index
    %c0_113 = arith.constant 0 : index
    %c0_114 = arith.constant 0 : index
    %122 = vector.load %arg8[%c1_112, %c0_113, %c0_114] : memref<2x8x16xf32, #tpu.memory_space<vmem>>, vector<1x8x16xf32>
    %123 = vector.shape_cast %122 : vector<1x8x16xf32> to vector<8x16xf32>
    %cst_115 = arith.constant dense<0.000000e+00> : vector<8x16xf32>
    %124 = tpu.matmul %118, %123, %cst_115 {dimension_numbers = #tpu.dot_dimension_numbers<[1], [0], [0], [1], [0, 0, 1, 1], [], []>} : vector<8x8xf32>, vector<8x16xf32>, vector<8x16xf32> -> vector<8x16xf32>
    %125 = arith.addf %121, %124 : vector<8x16xf32>
    %126 = tpu.concatenate %116, %125 in 1 : vector<8x16xf32>, vector<8x16xf32> -> vector<8x32xf32>
    %c0_116 = arith.constant 0 : index
    %c0_117 = arith.constant 0 : index
    %c4 = arith.constant 4 : index
    %c0_118 = arith.constant 0 : index
    %127 = vector.load %arg9[%c0_116, %c0_117, %c4, %c0_118] : memref<1x8x8x32xf32, #tpu.memory_space<vmem>>, vector<1x8x1x32xf32>
    %128 = vector.shape_cast %127 : vector<1x8x1x32xf32> to vector<8x32xf32>
    %129 = vector.shape_cast %126 : vector<8x32xf32> to vector<1x8x1x32xf32>
    tpu.vector_store %arg9[%c0_116, %c0_117, %c4, %c0_118], %129 {strides = array<i32>} : memref<1x8x8x32xf32, #tpu.memory_space<vmem>>, vector<1x8x1x32xf32>,
    %c0_119 = arith.constant 0 : index
    %c40 = arith.constant 40 : index
    %130 = vector.load %arg10[%c0_119, %c40] : memref<32x64xf32, #tpu.memory_space<vmem>>, vector<32x8xf32>
    %131 = vector.extract_strided_slice %130 {offsets = [0, 0], sizes = [8, 8], strides = [1, 1]} : vector<32x8xf32> to vector<8x8xf32>
    %132 = vector.extract_strided_slice %130 {offsets = [8, 0], sizes = [8, 8], strides = [1, 1]} : vector<32x8xf32> to vector<8x8xf32>
    %c0_120 = arith.constant 0 : index
    %c0_121 = arith.constant 0 : index
    %c0_122 = arith.constant 0 : index
    %133 = vector.load %arg8[%c0_120, %c0_121, %c0_122] : memref<2x8x16xf32, #tpu.memory_space<vmem>>, vector<1x8x16xf32>
    %134 = vector.shape_cast %133 : vector<1x8x16xf32> to vector<8x16xf32>
    %cst_123 = arith.constant dense<0.000000e+00> : vector<8x16xf32>
    %135 = tpu.matmul %131, %134, %cst_123 {dimension_numbers = #tpu.dot_dimension_numbers<[1], [0], [0], [1], [0, 0, 1, 1], [], []>} : vector<8x8xf32>, vector<8x16xf32>, vector<8x16xf32> -> vector<8x16xf32>
    %c1_124 = arith.constant 1 : index
    %c0_125 = arith.constant 0 : index
    %c0_126 = arith.constant 0 : index
    %136 = vector.load %arg8[%c1_124, %c0_125, %c0_126] : memref<2x8x16xf32, #tpu.memory_space<vmem>>, vector<1x8x16xf32>
    %137 = vector.shape_cast %136 : vector<1x8x16xf32> to vector<8x16xf32>
    %cst_127 = arith.constant dense<0.000000e+00> : vector<8x16xf32>
    %138 = tpu.matmul %132, %137, %cst_127 {dimension_numbers = #tpu.dot_dimension_numbers<[1], [0], [0], [1], [0, 0, 1, 1], [], []>} : vector<8x8xf32>, vector<8x16xf32>, vector<8x16xf32> -> vector<8x16xf32>
    %139 = arith.addf %135, %138 : vector<8x16xf32>
    %140 = vector.extract_strided_slice %130 {offsets = [16, 0], sizes = [8, 8], strides = [1, 1]} : vector<32x8xf32> to vector<8x8xf32>
    %141 = vector.extract_strided_slice %130 {offsets = [24, 0], sizes = [8, 8], strides = [1, 1]} : vector<32x8xf32> to vector<8x8xf32>
    %c0_128 = arith.constant 0 : index
    %c0_129 = arith.constant 0 : index
    %c0_130 = arith.constant 0 : index
    %142 = vector.load %arg8[%c0_128, %c0_129, %c0_130] : memref<2x8x16xf32, #tpu.memory_space<vmem>>, vector<1x8x16xf32>
    %143 = vector.shape_cast %142 : vector<1x8x16xf32> to vector<8x16xf32>
    %cst_131 = arith.constant dense<0.000000e+00> : vector<8x16xf32>
    %144 = tpu.matmul %140, %143, %cst_131 {dimension_numbers = #tpu.dot_dimension_numbers<[1], [0], [0], [1], [0, 0, 1, 1], [], []>} : vector<8x8xf32>, vector<8x16xf32>, vector<8x16xf32> -> vector<8x16xf32>
    %c1_132 = arith.constant 1 : index
    %c0_133 = arith.constant 0 : index
    %c0_134 = arith.constant 0 : index
    %145 = vector.load %arg8[%c1_132, %c0_133, %c0_134] : memref<2x8x16xf32, #tpu.memory_space<vmem>>, vector<1x8x16xf32>
    %146 = vector.shape_cast %145 : vector<1x8x16xf32> to vector<8x16xf32>
    %cst_135 = arith.constant dense<0.000000e+00> : vector<8x16xf32>
    %147 = tpu.matmul %141, %146, %cst_135 {dimension_numbers = #tpu.dot_dimension_numbers<[1], [0], [0], [1], [0, 0, 1, 1], [], []>} : vector<8x8xf32>, vector<8x16xf32>, vector<8x16xf32> -> vector<8x16xf32>
    %148 = arith.addf %144, %147 : vector<8x16xf32>
    %149 = tpu.concatenate %139, %148 in 1 : vector<8x16xf32>, vector<8x16xf32> -> vector<8x32xf32>
    %c0_136 = arith.constant 0 : index
    %c0_137 = arith.constant 0 : index
    %c5 = arith.constant 5 : index
    %c0_138 = arith.constant 0 : index
    %150 = vector.load %arg9[%c0_136, %c0_137, %c5, %c0_138] : memref<1x8x8x32xf32, #tpu.memory_space<vmem>>, vector<1x8x1x32xf32>
    %151 = vector.shape_cast %150 : vector<1x8x1x32xf32> to vector<8x32xf32>
    %152 = vector.shape_cast %149 : vector<8x32xf32> to vector<1x8x1x32xf32>
    tpu.vector_store %arg9[%c0_136, %c0_137, %c5, %c0_138], %152 {strides = array<i32>} : memref<1x8x8x32xf32, #tpu.memory_space<vmem>>, vector<1x8x1x32xf32>,
    %c0_139 = arith.constant 0 : index
    %c48 = arith.constant 48 : index
    %153 = vector.load %arg10[%c0_139, %c48] : memref<32x64xf32, #tpu.memory_space<vmem>>, vector<32x8xf32>
    %154 = vector.extract_strided_slice %153 {offsets = [0, 0], sizes = [8, 8], strides = [1, 1]} : vector<32x8xf32> to vector<8x8xf32>
    %155 = vector.extract_strided_slice %153 {offsets = [8, 0], sizes = [8, 8], strides = [1, 1]} : vector<32x8xf32> to vector<8x8xf32>
    %c0_140 = arith.constant 0 : index
    %c0_141 = arith.constant 0 : index
    %c0_142 = arith.constant 0 : index
    %156 = vector.load %arg8[%c0_140, %c0_141, %c0_142] : memref<2x8x16xf32, #tpu.memory_space<vmem>>, vector<1x8x16xf32>
    %157 = vector.shape_cast %156 : vector<1x8x16xf32> to vector<8x16xf32>
    %cst_143 = arith.constant dense<0.000000e+00> : vector<8x16xf32>
    %158 = tpu.matmul %154, %157, %cst_143 {dimension_numbers = #tpu.dot_dimension_numbers<[1], [0], [0], [1], [0, 0, 1, 1], [], []>} : vector<8x8xf32>, vector<8x16xf32>, vector<8x16xf32> -> vector<8x16xf32>
    %c1_144 = arith.constant 1 : index
    %c0_145 = arith.constant 0 : index
    %c0_146 = arith.constant 0 : index
    %159 = vector.load %arg8[%c1_144, %c0_145, %c0_146] : memref<2x8x16xf32, #tpu.memory_space<vmem>>, vector<1x8x16xf32>
    %160 = vector.shape_cast %159 : vector<1x8x16xf32> to vector<8x16xf32>
    %cst_147 = arith.constant dense<0.000000e+00> : vector<8x16xf32>
    %161 = tpu.matmul %155, %160, %cst_147 {dimension_numbers = #tpu.dot_dimension_numbers<[1], [0], [0], [1], [0, 0, 1, 1], [], []>} : vector<8x8xf32>, vector<8x16xf32>, vector<8x16xf32> -> vector<8x16xf32>
    %162 = arith.addf %158, %161 : vector<8x16xf32>
    %163 = vector.extract_strided_slice %153 {offsets = [16, 0], sizes = [8, 8], strides = [1, 1]} : vector<32x8xf32> to vector<8x8xf32>
    %164 = vector.extract_strided_slice %153 {offsets = [24, 0], sizes = [8, 8], strides = [1, 1]} : vector<32x8xf32> to vector<8x8xf32>
    %c0_148 = arith.constant 0 : index
    %c0_149 = arith.constant 0 : index
    %c0_150 = arith.constant 0 : index
    %165 = vector.load %arg8[%c0_148, %c0_149, %c0_150] : memref<2x8x16xf32, #tpu.memory_space<vmem>>, vector<1x8x16xf32>
    %166 = vector.shape_cast %165 : vector<1x8x16xf32> to vector<8x16xf32>
    %cst_151 = arith.constant dense<0.000000e+00> : vector<8x16xf32>
    %167 = tpu.matmul %163, %166, %cst_151 {dimension_numbers = #tpu.dot_dimension_numbers<[1], [0], [0], [1], [0, 0, 1, 1], [], []>} : vector<8x8xf32>, vector<8x16xf32>, vector<8x16xf32> -> vector<8x16xf32>
    %c1_152 = arith.constant 1 : index
    %c0_153 = arith.constant 0 : index
    %c0_154 = arith.constant 0 : index
    %168 = vector.load %arg8[%c1_152, %c0_153, %c0_154] : memref<2x8x16xf32, #tpu.memory_space<vmem>>, vector<1x8x16xf32>
    %169 = vector.shape_cast %168 : vector<1x8x16xf32> to vector<8x16xf32>
    %cst_155 = arith.constant dense<0.000000e+00> : vector<8x16xf32>
    %170 = tpu.matmul %164, %169, %cst_155 {dimension_numbers = #tpu.dot_dimension_numbers<[1], [0], [0], [1], [0, 0, 1, 1], [], []>} : vector<8x8xf32>, vector<8x16xf32>, vector<8x16xf32> -> vector<8x16xf32>
    %171 = arith.addf %167, %170 : vector<8x16xf32>
    %172 = tpu.concatenate %162, %171 in 1 : vector<8x16xf32>, vector<8x16xf32> -> vector<8x32xf32>
    %c0_156 = arith.constant 0 : index
    %c0_157 = arith.constant 0 : index
    %c6 = arith.constant 6 : index
    %c0_158 = arith.constant 0 : index
    %173 = vector.load %arg9[%c0_156, %c0_157, %c6, %c0_158] : memref<1x8x8x32xf32, #tpu.memory_space<vmem>>, vector<1x8x1x32xf32>
    %174 = vector.shape_cast %173 : vector<1x8x1x32xf32> to vector<8x32xf32>
    %175 = vector.shape_cast %172 : vector<8x32xf32> to vector<1x8x1x32xf32>
    tpu.vector_store %arg9[%c0_156, %c0_157, %c6, %c0_158], %175 {strides = array<i32>} : memref<1x8x8x32xf32, #tpu.memory_space<vmem>>, vector<1x8x1x32xf32>,
    %c0_159 = arith.constant 0 : index
    %c56 = arith.constant 56 : index
    %176 = vector.load %arg10[%c0_159, %c56] : memref<32x64xf32, #tpu.memory_space<vmem>>, vector<32x8xf32>
    %177 = vector.extract_strided_slice %176 {offsets = [0, 0], sizes = [8, 8], strides = [1, 1]} : vector<32x8xf32> to vector<8x8xf32>
    %178 = vector.extract_strided_slice %176 {offsets = [8, 0], sizes = [8, 8], strides = [1, 1]} : vector<32x8xf32> to vector<8x8xf32>
    %c0_160 = arith.constant 0 : index
    %c0_161 = arith.constant 0 : index
    %c0_162 = arith.constant 0 : index
    %179 = vector.load %arg8[%c0_160, %c0_161, %c0_162] : memref<2x8x16xf32, #tpu.memory_space<vmem>>, vector<1x8x16xf32>
    %180 = vector.shape_cast %179 : vector<1x8x16xf32> to vector<8x16xf32>
    %cst_163 = arith.constant dense<0.000000e+00> : vector<8x16xf32>
    %181 = tpu.matmul %177, %180, %cst_163 {dimension_numbers = #tpu.dot_dimension_numbers<[1], [0], [0], [1], [0, 0, 1, 1], [], []>} : vector<8x8xf32>, vector<8x16xf32>, vector<8x16xf32> -> vector<8x16xf32>
    %c1_164 = arith.constant 1 : index
    %c0_165 = arith.constant 0 : index
    %c0_166 = arith.constant 0 : index
    %182 = vector.load %arg8[%c1_164, %c0_165, %c0_166] : memref<2x8x16xf32, #tpu.memory_space<vmem>>, vector<1x8x16xf32>
    %183 = vector.shape_cast %182 : vector<1x8x16xf32> to vector<8x16xf32>
    %cst_167 = arith.constant dense<0.000000e+00> : vector<8x16xf32>
    %184 = tpu.matmul %178, %183, %cst_167 {dimension_numbers = #tpu.dot_dimension_numbers<[1], [0], [0], [1], [0, 0, 1, 1], [], []>} : vector<8x8xf32>, vector<8x16xf32>, vector<8x16xf32> -> vector<8x16xf32>
    %185 = arith.addf %181, %184 : vector<8x16xf32>
    %186 = vector.extract_strided_slice %176 {offsets = [16, 0], sizes = [8, 8], strides = [1, 1]} : vector<32x8xf32> to vector<8x8xf32>
    %187 = vector.extract_strided_slice %176 {offsets = [24, 0], sizes = [8, 8], strides = [1, 1]} : vector<32x8xf32> to vector<8x8xf32>
    %c0_168 = arith.constant 0 : index
    %c0_169 = arith.constant 0 : index
    %c0_170 = arith.constant 0 : index
    %188 = vector.load %arg8[%c0_168, %c0_169, %c0_170] : memref<2x8x16xf32, #tpu.memory_space<vmem>>, vector<1x8x16xf32>
    %189 = vector.shape_cast %188 : vector<1x8x16xf32> to vector<8x16xf32>
    %cst_171 = arith.constant dense<0.000000e+00> : vector<8x16xf32>
    %190 = tpu.matmul %186, %189, %cst_171 {dimension_numbers = #tpu.dot_dimension_numbers<[1], [0], [0], [1], [0, 0, 1, 1], [], []>} : vector<8x8xf32>, vector<8x16xf32>, vector<8x16xf32> -> vector<8x16xf32>
    %c1_172 = arith.constant 1 : index
    %c0_173 = arith.constant 0 : index
    %c0_174 = arith.constant 0 : index
    %191 = vector.load %arg8[%c1_172, %c0_173, %c0_174] : memref<2x8x16xf32, #tpu.memory_space<vmem>>, vector<1x8x16xf32>
    %192 = vector.shape_cast %191 : vector<1x8x16xf32> to vector<8x16xf32>
    %cst_175 = arith.constant dense<0.000000e+00> : vector<8x16xf32>
    %193 = tpu.matmul %187, %192, %cst_175 {dimension_numbers = #tpu.dot_dimension_numbers<[1], [0], [0], [1], [0, 0, 1, 1], [], []>} : vector<8x8xf32>, vector<8x16xf32>, vector<8x16xf32> -> vector<8x16xf32>
    %194 = arith.addf %190, %193 : vector<8x16xf32>
    %195 = tpu.concatenate %185, %194 in 1 : vector<8x16xf32>, vector<8x16xf32> -> vector<8x32xf32>
    %c0_176 = arith.constant 0 : index
    %c0_177 = arith.constant 0 : index
    %c7 = arith.constant 7 : index
    %c0_178 = arith.constant 0 : index
    %196 = vector.load %arg9[%c0_176, %c0_177, %c7, %c0_178] : memref<1x8x8x32xf32, #tpu.memory_space<vmem>>, vector<1x8x1x32xf32>
    %197 = vector.shape_cast %196 : vector<1x8x1x32xf32> to vector<8x32xf32>
    %198 = vector.shape_cast %195 : vector<8x32xf32> to vector<1x8x1x32xf32>
    tpu.vector_store %arg9[%c0_176, %c0_177, %c7, %c0_178], %198 {strides = array<i32>} : memref<1x8x8x32xf32, #tpu.memory_space<vmem>>, vector<1x8x1x32xf32>,
    return
  }
  func.func @transform_0(%arg0: i32, %arg1: i32) -> (i32, i32, i32) {
    %c0_i32 = arith.constant 0 : i32
    %c0_i32_0 = arith.constant 0 : i32
    return %arg0, %c0_i32, %arg1 : i32, i32, i32
  }
  func.func @transform_1(%arg0: i32, %arg1: i32) -> (i32, i32, i32) {
    %c0_i32 = arith.constant 0 : i32
    %c0_i32_0 = arith.constant 0 : i32
    return %arg0, %c0_i32, %arg1 : i32, i32, i32
  }
  func.func @transform_2(%arg0: i32, %arg1: i32) -> (i32, i32) {
    %c0_i32 = arith.constant 0 : i32
    %c0_i32_0 = arith.constant 0 : i32
    %c0_i32_1 = arith.constant 0 : i32
    return %c0_i32, %c0_i32_0 : i32, i32
  }
  func.func @transform_3(%arg0: i32, %arg1: i32) -> (i32, i32) {
    %c0_i32 = arith.constant 0 : i32
    %c0_i32_0 = arith.constant 0 : i32
    %c0_i32_1 = arith.constant 0 : i32
    return %c0_i32, %c0_i32_0 : i32, i32
  }
  func.func @transform_4(%arg0: i32, %arg1: i32) -> (i32, i32) {
    %c0_i32 = arith.constant 0 : i32
    %c0_i32_0 = arith.constant 0 : i32
    %c0_i32_1 = arith.constant 0 : i32
    return %c0_i32, %c0_i32_0 : i32, i32
  }
  func.func @transform_5(%arg0: i32, %arg1: i32) -> (i32, i32) {
    %c0_i32 = arith.constant 0 : i32
    %c0_i32_0 = arith.constant 0 : i32
    %c0_i32_1 = arith.constant 0 : i32
    return %c0_i32, %c0_i32_0 : i32, i32
  }
  func.func @transform_6(%arg0: i32, %arg1: i32) -> (i32, i32, i32) {
    %c0_i32 = arith.constant 0 : i32
    %c0_i32_0 = arith.constant 0 : i32
    %c0_i32_1 = arith.constant 0 : i32
    %c0_i32_2 = arith.constant 0 : i32
    return %c0_i32, %c0_i32_0, %c0_i32_1 : i32, i32, i32
  }
  func.func @transform_7(%arg0: i32, %arg1: i32) -> (i32, i32, i32, i32) {
    %c0_i32 = arith.constant 0 : i32
    %c0_i32_0 = arith.constant 0 : i32
    %c0_i32_1 = arith.constant 0 : i32
    return %arg0, %c0_i32, %arg1, %c0_i32_0 : i32, i32, i32, i32
  }
}

</mosaic_0001>

<llo_original>
// kernel: quantizer_decoder_forward.1
$region0: #{quantizer_decoder_forward.1}
  #allocation0 [shape = 'u32[]', space=smem, size = 0x4, offset = 0x4, fixed_abs, tag = 'smem constant byte address 0x4 - core index']
  #allocation1 [shape = 'u32[72,128]{1,0:T(1,128)}', space=vmem, size = 0x9000, scoped, tag = 'internal scratch']
  #allocation2 [shape = 'f32[32,64]{1,0:T(8,128)}', space=vmem, size = 0x4000, scoped, tag = 'scratch operand']
  %s0 = inlined_call_operand.vmem [shape: f32[2,16,64], index: 0, kind: input, shape index: {}]
  %s1 = inlined_call_operand.vmem [shape: f32[2,16,64], index: 1, kind: input, shape index: {}]
  %s2 = inlined_call_operand.vmem [shape: f32[32,16], index: 2, kind: input, shape index: {}]
  %s3 = inlined_call_operand.vmem [shape: f32[32,16], index: 3, kind: input, shape index: {}]
  %s4 = inlined_call_operand.vmem [shape: f32[32,32], index: 4, kind: input, shape index: {}]
  %s5 = inlined_call_operand.vmem [shape: f32[32,1], index: 5, kind: input, shape index: {}]
  %s6 = inlined_call_operand.vmem [shape: f32[2,8,16], index: 6, kind: input, shape index: {}]
  %s7 = inlined_call_operand.vmem [shape: f32[2,8,8,32], index: 7, kind: output, shape index: {}]
  %s8 = sld [smem:[#allocation0]]
  $region61: #{quantizer_decoder_forward.1} parent=0
    _
  %s10 = ssub.s32 1, %s8
  %s11 = scalar_select 0, %s10, %s8
  loop: start=0, step=1, limit=4
  $region2: #{quantizer_decoder_forward.1} parent=0 // loop_pre_header
    _
  $region3: #{quantizer_decoder_forward.1} parent=0 // loop_header
    %s13 = sphi 0, %s17
    %p14 = scmp.ge.s32.totalorder %s13, 4
    %s20 = sphi 0, %s32
    %s21 = sphi 0, %s28
    %s22 = sphi 0, %s20
    %s23 = sphi 0, %s21
    %s24 = sphi 0, %s22
    %s25 = sphi 0, %s23
    %s37 = sphi 0, %s39
    %s40 = sphi 0, %s37
    %s41 = sphi 0, %s40
    %s57 = sphi 0, %s41
    %s65 = sphi 0, %s67
    %s68 = sphi 0, %s65
    %s69 = sphi 0, %s68
    %s85 = sphi 0, %s69
    %s89 = sphi 0, %s89
    %s91 = sphi 0, %s89
    %s92 = sphi 0, %s91
    %s106 = sphi 0, %s92
    %s110 = sphi 0, %s110
    %s112 = sphi 0, %s110
    %s113 = sphi 0, %s112
    %s127 = sphi 0, %s113
    %s131 = sphi 0, %s131
    %s133 = sphi 0, %s131
    %s134 = sphi 0, %s133
    %s148 = sphi 0, %s134
    %s152 = sphi 0, %s152
    %s154 = sphi 0, %s152
    %s155 = sphi 0, %s154
    %s169 = sphi 0, %s155
    %s173 = sphi 0, %s173
    %s175 = sphi 0, %s173
    %s176 = sphi 0, %s175
    %s190 = sphi 0, %s176
    %s198 = sphi 0, %s200
    %s201 = sphi 0, %s198
    %s202 = sphi 0, %s201
    %s218 = sphi 0, %s202
  $region4: #{quantizer_decoder_forward.1} parent=0 // loop_header_branch
    %16 = sbr.rel (%p14) target = $region8
  $region5: #{quantizer_decoder_forward.1} parent=0 // loop_body
    %s18 = ssub.s32 %s13, 1
    %s19 = ssub.s32 %s13, 2
    %s26 = sadd.s32 1, %s21
    %p27 = scmp.ge.s32.totalorder %s26, 1
    %s28 = scalar_select %p27, 0, %s26
    %s29 = sadd.s32 1, %s20
    %s30 = scalar_select %p27, %s29, %s20
    %p31 = scmp.ge.s32.totalorder %s30, 2
    %s32 = scalar_select %p31, 0, %s30
    %s33 = ssub.s32 %s20, %s32
    %s34 = ssub.s32 %s21, %s28
    %s35 = sor.u32 %s33, %s34
    %p36 = scmp.eq.s32.totalorder %s35, 0
    %s38 = sadd.s32 %s37, 1
    %s39 = scalar_select %p36, %s37, %s38
    %p42 = pneg %p36
    %p43 = scmp.eq.s32.totalorder %s13, 1
    %p44 = por %p42, %p43
    %p45 = scmp.ne.s32.totalorder %s37, %s40
    %p46 = scmp.eq.s32.totalorder %s13, 0
    %p47 = por %p45, %p46
    %p48 = scmp.ne.s32.totalorder %s37, %s40
    %p49 = scmp.eq.s32.totalorder %s18, 1
    %p50 = por %p48, %p49
    %p51 = scmp.ne.s32.totalorder %s40, %s41
    %p52 = scmp.eq.s32.totalorder %s18, 0
    %p53 = por %p51, %p52
    %p54 = scmp.ne.s32.totalorder %s40, %s41
    %p55 = scmp.eq.s32.totalorder %s19, 1
    %p56 = por %p54, %p55
    %p58 = scmp.ne.s32.totalorder %s41, %s57
    %p59 = scmp.eq.s32.totalorder %s19, 0
    %p60 = por %p58, %p59
    %s61 = ssub.s32 %s20, %s32
    %s62 = ssub.s32 %s21, %s28
    %s63 = sor.u32 %s61, %s62
    %p64 = scmp.eq.s32.totalorder %s63, 0
    %s66 = sadd.s32 %s65, 1
    %s67 = scalar_select %p64, %s65, %s66
    %p70 = pneg %p64
    %p71 = scmp.eq.s32.totalorder %s13, 1
    %p72 = por %p70, %p71
    %p73 = scmp.ne.s32.totalorder %s65, %s68
    %p74 = scmp.eq.s32.totalorder %s13, 0
    %p75 = por %p73, %p74
    %p76 = scmp.ne.s32.totalorder %s65, %s68
    %p77 = scmp.eq.s32.totalorder %s18, 1
    %p78 = por %p76, %p77
    %p79 = scmp.ne.s32.totalorder %s68, %s69
    %p80 = scmp.eq.s32.totalorder %s18, 0
    %p81 = por %p79, %p80
    %p82 = scmp.ne.s32.totalorder %s68, %s69
    %p83 = scmp.eq.s32.totalorder %s19, 1
    %p84 = por %p82, %p83
    %p86 = scmp.ne.s32.totalorder %s69, %s85
    %p87 = scmp.eq.s32.totalorder %s19, 0
    %p88 = por %p86, %p87
    %s90 = sadd.s32 %s89, 1
    %p93 = scmp.eq.s32.totalorder %s13, 1
    %p94 = scmp.ne.s32.totalorder %s89, %s91
    %p95 = scmp.eq.s32.totalorder %s13, 0
    %p96 = por %p94, %p95
    %p97 = scmp.ne.s32.totalorder %s89, %s91
    %p98 = scmp.eq.s32.totalorder %s18, 1
    %p99 = por %p97, %p98
    %p100 = scmp.ne.s32.totalorder %s91, %s92
    %p101 = scmp.eq.s32.totalorder %s18, 0
    %p102 = por %p100, %p101
    %p103 = scmp.ne.s32.totalorder %s91, %s92
    %p104 = scmp.eq.s32.totalorder %s19, 1
    %p105 = por %p103, %p104
    %p107 = scmp.ne.s32.totalorder %s92, %s106
    %p108 = scmp.eq.s32.totalorder %s19, 0
    %p109 = por %p107, %p108
    %s111 = sadd.s32 %s110, 1
    %p114 = scmp.eq.s32.totalorder %s13, 1
    %p115 = scmp.ne.s32.totalorder %s110, %s112
    %p116 = scmp.eq.s32.totalorder %s13, 0
    %p117 = por %p115, %p116
    %p118 = scmp.ne.s32.totalorder %s110, %s112
    %p119 = scmp.eq.s32.totalorder %s18, 1
    %p120 = por %p118, %p119
    %p121 = scmp.ne.s32.totalorder %s112, %s113
    %p122 = scmp.eq.s32.totalorder %s18, 0
    %p123 = por %p121, %p122
    %p124 = scmp.ne.s32.totalorder %s112, %s113
    %p125 = scmp.eq.s32.totalorder %s19, 1
    %p126 = por %p124, %p125
    %p128 = scmp.ne.s32.totalorder %s113, %s127
    %p129 = scmp.eq.s32.totalorder %s19, 0
    %p130 = por %p128, %p129
    %s132 = sadd.s32 %s131, 1
    %p135 = scmp.eq.s32.totalorder %s13, 1
    %p136 = scmp.ne.s32.totalorder %s131, %s133
    %p137 = scmp.eq.s32.totalorder %s13, 0
    %p138 = por %p136, %p137
    %p139 = scmp.ne.s32.totalorder %s131, %s133
    %p140 = scmp.eq.s32.totalorder %s18, 1
    %p141 = por %p139, %p140
    %p142 = scmp.ne.s32.totalorder %s133, %s134
    %p143 = scmp.eq.s32.totalorder %s18, 0
    %p144 = por %p142, %p143
    %p145 = scmp.ne.s32.totalorder %s133, %s134
    %p146 = scmp.eq.s32.totalorder %s19, 1
    %p147 = por %p145, %p146
    %p149 = scmp.ne.s32.totalorder %s134, %s148
    %p150 = scmp.eq.s32.totalorder %s19, 0
    %p151 = por %p149, %p150
    %s153 = sadd.s32 %s152, 1
    %p156 = scmp.eq.s32.totalorder %s13, 1
    %p157 = scmp.ne.s32.totalorder %s152, %s154
    %p158 = scmp.eq.s32.totalorder %s13, 0
    %p159 = por %p157, %p158
    %p160 = scmp.ne.s32.totalorder %s152, %s154
    %p161 = scmp.eq.s32.totalorder %s18, 1
    %p162 = por %p160, %p161
    %p163 = scmp.ne.s32.totalorder %s154, %s155
    %p164 = scmp.eq.s32.totalorder %s18, 0
    %p165 = por %p163, %p164
    %p166 = scmp.ne.s32.totalorder %s154, %s155
    %p167 = scmp.eq.s32.totalorder %s19, 1
    %p168 = por %p166, %p167
    %p170 = scmp.ne.s32.totalorder %s155, %s169
    %p171 = scmp.eq.s32.totalorder %s19, 0
    %p172 = por %p170, %p171
    %s174 = sadd.s32 %s173, 1
    %p177 = scmp.eq.s32.totalorder %s13, 1
    %p178 = scmp.ne.s32.totalorder %s173, %s175
    %p179 = scmp.eq.s32.totalorder %s13, 0
    %p180 = por %p178, %p179
    %p181 = scmp.ne.s32.totalorder %s173, %s175
    %p182 = scmp.eq.s32.totalorder %s18, 1
    %p183 = por %p181, %p182
    %p184 = scmp.ne.s32.totalorder %s175, %s176
    %p185 = scmp.eq.s32.totalorder %s18, 0
    %p186 = por %p184, %p185
    %p187 = scmp.ne.s32.totalorder %s175, %s176
    %p188 = scmp.eq.s32.totalorder %s19, 1
    %p189 = por %p187, %p188
    %p191 = scmp.ne.s32.totalorder %s176, %s190
    %p192 = scmp.eq.s32.totalorder %s19, 0
    %p193 = por %p191, %p192
    %s194 = ssub.s32 %s20, %s32
    %s195 = ssub.s32 %s21, %s28
    %s196 = sor.u32 %s194, %s195
    %p197 = scmp.eq.s32.totalorder %s196, 0
    %s199 = sadd.s32 %s198, 1
    %s200 = scalar_select %p197, %s198, %s199
    %p203 = pneg %p197
    %p204 = scmp.eq.s32.totalorder %s13, 1
    %p205 = por %p203, %p204
    %p206 = scmp.ne.s32.totalorder %s198, %s201
    %p207 = scmp.eq.s32.totalorder %s13, 0
    %p208 = por %p206, %p207
    %p209 = scmp.ne.s32.totalorder %s198, %s201
    %p210 = scmp.eq.s32.totalorder %s18, 1
    %p211 = por %p209, %p210
    %p212 = scmp.ne.s32.totalorder %s201, %s202
    %p213 = scmp.eq.s32.totalorder %s18, 0
    %p214 = por %p212, %p213
    %p215 = scmp.ne.s32.totalorder %s201, %s202
    %p216 = scmp.eq.s32.totalorder %s19, 1
    %p217 = por %p215, %p216
    %p219 = scmp.ne.s32.totalorder %s202, %s218
    %p220 = scmp.eq.s32.totalorder %s19, 0
    %p221 = por %p219, %p220
    %p222 = scmp.le.s32.totalorder 1, %s13
    %p223 = scmp.lt.s32.totalorder %s13, 3
    %p224 = pnand %p222, %p223
    %p225 = pneg %p224
    // Predicated region
    $region9: #{quantizer_decoder_forward.1} parent=5 // pred_check
      _
    $region10: #{quantizer_decoder_forward.1} parent=5 // pred_check_branch
      %227 = sbr.rel (%p224) target = $region12
    $region11: #{quantizer_decoder_forward.1} parent=5 // pred_region
      %s228 = ssub.s32 %s13, 1
      // Predicated region
      $region13: #{quantizer_decoder_forward.1} parent=11 // pred_check
        %p229 = pneg %p102
      $region14: #{quantizer_decoder_forward.1} parent=11 // pred_check_branch
        %231 = sbr.rel (%p229) target = $region16
      $region15: #{quantizer_decoder_forward.1} parent=11 // pred_region
        _
      $region16: #{quantizer_decoder_forward.1} parent=11 // pred_fallthru
        _
      // Predicated region
      $region17: #{quantizer_decoder_forward.1} parent=11 // pred_check
        %p232 = pneg %p123
      $region18: #{quantizer_decoder_forward.1} parent=11 // pred_check_branch
        %234 = sbr.rel (%p232) target = $region20
      $region19: #{quantizer_decoder_forward.1} parent=11 // pred_region
        _
      $region20: #{quantizer_decoder_forward.1} parent=11 // pred_fallthru
        _
      // Predicated region
      $region21: #{quantizer_decoder_forward.1} parent=11 // pred_check
        %p235 = pneg %p144
      $region22: #{quantizer_decoder_forward.1} parent=11 // pred_check_branch
        %237 = sbr.rel (%p235) target = $region24
      $region23: #{quantizer_decoder_forward.1} parent=11 // pred_region
        _
      $region24: #{quantizer_decoder_forward.1} parent=11 // pred_fallthru
        _
      // Predicated region
      $region25: #{quantizer_decoder_forward.1} parent=11 // pred_check
        %p238 = pneg %p165
      $region26: #{quantizer_decoder_forward.1} parent=11 // pred_check_branch
        %240 = sbr.rel (%p238) target = $region28
      $region27: #{quantizer_decoder_forward.1} parent=11 // pred_region
        _
      $region28: #{quantizer_decoder_forward.1} parent=11 // pred_fallthru
        _
      // Predicated region
      $region29: #{quantizer_decoder_forward.1} parent=11 // pred_check
        %p241 = pneg %p186
      $region30: #{quantizer_decoder_forward.1} parent=11 // pred_check_branch
        %243 = sbr.rel (%p241) target = $region32
      $region31: #{quantizer_decoder_forward.1} parent=11 // pred_region
        _
      $region32: #{quantizer_decoder_forward.1} parent=11 // pred_fallthru
        _
    $region12: #{quantizer_decoder_forward.1} parent=5 // pred_fallthru
      _
    %p244 = scmp.lt.s32.totalorder %s13, 2
    // Predicated region
    $region33: #{quantizer_decoder_forward.1} parent=5 // pred_check
      %p245 = pneg %p244
    $region34: #{quantizer_decoder_forward.1} parent=5 // pred_check_branch
      %247 = sbr.rel (%p245) target = $region36
    $region35: #{quantizer_decoder_forward.1} parent=5 // pred_region
      // Predicated region
      $region37: #{quantizer_decoder_forward.1} parent=35 // pred_check
        %p248 = pneg %p47
      $region38: #{quantizer_decoder_forward.1} parent=35 // pred_check_branch
        %250 = sbr.rel (%p248) target = $region40
      $region39: #{quantizer_decoder_forward.1} parent=35 // pred_region
        %p251 = scmp.lt.s32.totalorder %s20, 1
        %s252 = scalar_select %p251, %s20, 1
        %p253 = scmp.lt.s32.totalorder %s21, 0
        %s254 = scalar_select %p253, %s21, 0
        %s255 = smul.addr %s252, 2
        %s256 = sadd.s32 %s254, %s255
        %s257 = smul.addr %s256, 8
        %s258 = scalar_lea.vmem %s0, %s257
      $region40: #{quantizer_decoder_forward.1} parent=35 // pred_fallthru
        _
      // Predicated region
      $region41: #{quantizer_decoder_forward.1} parent=35 // pred_check
        %p259 = pneg %p75
      $region42: #{quantizer_decoder_forward.1} parent=35 // pred_check_branch
        %261 = sbr.rel (%p259) target = $region44
      $region43: #{quantizer_decoder_forward.1} parent=35 // pred_region
        %p262 = scmp.lt.s32.totalorder %s20, 1
        %s263 = scalar_select %p262, %s20, 1
        %p264 = scmp.lt.s32.totalorder %s21, 0
        %s265 = scalar_select %p264, %s21, 0
        %s266 = smul.addr %s263, 2
        %s267 = sadd.s32 %s265, %s266
        %s268 = smul.addr %s267, 8
        %s269 = scalar_lea.vmem %s1, %s268
      $region44: #{quantizer_decoder_forward.1} parent=35 // pred_fallthru
        _
    $region36: #{quantizer_decoder_forward.1} parent=5 // pred_fallthru
      _
    %p270 = scmp.le.s32.totalorder 1, %s13
    %p271 = scmp.lt.s32.totalorder %s13, 3
    %p272 = pnand %p270, %p271
    %p273 = pneg %p272
    // Predicated region
    $region45: #{quantizer_decoder_forward.1} parent=5 // pred_check
      _
    $region46: #{quantizer_decoder_forward.1} parent=5 // pred_check_branch
      %275 = sbr.rel (%p272) target = $region48
    $region47: #{quantizer_decoder_forward.1} parent=5 // pred_region
      %s276 = ssub.s32 %s13, 1
      %p277 = scmp.lt.s32.totalorder %s22, 1
      %s278 = scalar_select %p277, %s22, 1
      %p279 = scmp.lt.s32.totalorder %s23, 0
      %s280 = scalar_select %p279, %s23, 0
      %s281 = smul.addr %s278, 2
      %s282 = sadd.s32 %s280, %s281
      %s283 = smul.addr %s282, 8
      %s284 = scalar_lea.vmem %s0, %s283
      %p285 = pneg %p53
      %p286 = pneg %p50
      %p287 = scmp.lt.s32.totalorder %s22, 1
      %s288 = scalar_select %p287, %s22, 1
      %p289 = scmp.lt.s32.totalorder %s23, 0
      %s290 = scalar_select %p289, %s23, 0
      %s291 = smul.addr %s288, 2
      %s292 = sadd.s32 %s290, %s291
      %s293 = smul.addr %s292, 8
      %s294 = scalar_lea.vmem %s1, %s293
      %p295 = pneg %p81
      %p296 = pneg %p78
      %p297 = pneg %p102
      %p298 = pneg %p99
      %p299 = pneg %p123
      %p300 = pneg %p120
      %p301 = pneg %p144
      %p302 = pneg %p141
      %p303 = pneg %p165
      %p304 = pneg %p162
      %p305 = pneg %p186
      %p306 = pneg %p183
      %p307 = pneg %p214
      %p308 = pneg %p211
      %p309 = scmp.lt.s32.totalorder %s22, 1
      %s310 = scalar_select %p309, %s22, 1
      %p311 = scmp.lt.s32.totalorder %s23, 0
      %s312 = scalar_select %p311, %s23, 0
      %s313 = smul.addr %s310, 8
      %s314 = sadd.s32 %s312, %s313
      %s315 = smul.addr %s314, 8
      %s316 = scalar_lea.vmem %s7, %s315
      %p317 = scmp.lt.s32.totalorder %s22, 1
      %s318 = scalar_select %p317, %s22, 1
      %p319 = scmp.lt.s32.totalorder %s23, 0
      %s320 = scalar_select %p319, %s23, 0
      %s321 = smul.addr %s318, 2
      %s322 = sadd.s32 %s320, %s321
      %s323 = smul.addr %s322, 8
      %s324 = scalar_lea.vmem %s0, %s323
      %p325 = scmp.lt.s32.totalorder %s22, 1
      %s326 = scalar_select %p325, %s22, 1
      %p327 = scmp.lt.s32.totalorder %s23, 0
      %s328 = scalar_select %p327, %s23, 0
      %s329 = smul.addr %s326, 2
      %s330 = sadd.s32 %s328, %s329
      %s331 = smul.addr %s330, 8
      %s332 = scalar_lea.vmem %s1, %s331
      %p333 = scmp.lt.s32.totalorder %s22, 1
      %s334 = scalar_select %p333, %s22, 1
      %p335 = scmp.lt.s32.totalorder %s23, 0
      %s336 = scalar_select %p335, %s23, 0
      %s337 = smul.addr %s334, 8
      %s338 = sadd.s32 %s336, %s337
      %s339 = smul.addr %s338, 8
      %s340 = scalar_lea.vmem %s7, %s339
      %v341 = vld [vmem:[%s2] sm:$0xff]
      %v342 = vld [vmem:[%s2 + $0x8] sm:$0xff]
      %v343 = vld [vmem:[%s2 + $0x10] sm:$0xff]
      %v344 = vld [vmem:[%s2 + $0x18] sm:$0xff]
      %v345 = vld [vmem:[%s324] sm:$0xff]
      %v346 = vld [vmem:[%s324 + $0x8] sm:$0xff]
      %v347 = vld [vmem:[%s3] sm:$0xff]
      %v348 = vld [vmem:[%s3 + $0x8] sm:$0xff]
      %v349 = vld [vmem:[%s3 + $0x10] sm:$0xff]
      %v350 = vld [vmem:[%s3 + $0x18] sm:$0xff]
      %v351 = vld [vmem:[%s332] sm:$0xff]
      %v352 = vld [vmem:[%s332 + $0x8] sm:$0xff]
      %vm353 = vcmask 130048
      %v355 = vsel %vm353, %v347, 0
      %v358 = vsel %vm353, %v348, 0
      %v361 = vsel %vm353, %v349, 0
      %v364 = vsel %vm353, %v350, 0
      %366 = vmatpush.msra.mxu0 0.0
      %367 = vmatpush.msra.mxu0 0.0
      %368 = vmatpush.msra.mxu0 0.0
      %369 = vmatpush.msra.mxu0 0.0
      %370 = vmatpush.msra.mxu0 0.0
      %371 = vmatpush.msra.mxu0 0.0
      %372 = vmatpush.msra.mxu0 0.0
      %373 = vmatpush.msra.mxu0 0.0
      %374 = vmatpush.msra.mxu0 0.0
      %375 = vmatpush.msra.mxu0 0.0
      %376 = vmatpush.msra.mxu0 0.0
      %377 = vmatpush.msra.mxu0 0.0
      %378 = vmatpush.msra.mxu0 0.0
      %379 = vmatpush.msra.mxu0 0.0
      %380 = vmatpush.msra.mxu0 %v352
      %381 = vmatpush.msra.mxu0 %v351
      %382 = vmatmul.f32.gmra.mxu0 %v355
      %v383 = vpop.f32.mrf.mxu0
      %v384 = vadd.f32 0.0, %v383
      %385 = vmatmul.f32.gmra.mxu0 %v358
      %v386 = vpop.f32.mrf.mxu0
      %v387 = vadd.f32 0.0, %v386
      %388 = vmatmul.f32.gmra.mxu0 %v361
      %v389 = vpop.f32.mrf.mxu0
      %v390 = vadd.f32 0.0, %v389
      %391 = vmatmul.f32.gmra.mxu0 %v364
      %v392 = vpop.f32.mrf.mxu0
      %v393 = vadd.f32 0.0, %v392
      %394 = vdwg.mxu0
      %v396 = vsel %vm353, %v341, 0
      %v399 = vsel %vm353, %v342, 0
      %v402 = vsel %vm353, %v343, 0
      %v405 = vsel %vm353, %v344, 0
      %407 = vmatpush.msra.mxu0 0.0
      %408 = vmatpush.msra.mxu0 0.0
      %409 = vmatpush.msra.mxu0 0.0
      %410 = vmatpush.msra.mxu0 0.0
      %411 = vmatpush.msra.mxu0 0.0
      %412 = vmatpush.msra.mxu0 0.0
      %413 = vmatpush.msra.mxu0 0.0
      %414 = vmatpush.msra.mxu0 0.0
      %415 = vmatpush.msra.mxu0 0.0
      %416 = vmatpush.msra.mxu0 0.0
      %417 = vmatpush.msra.mxu0 0.0
      %418 = vmatpush.msra.mxu0 0.0
      %419 = vmatpush.msra.mxu0 0.0
      %420 = vmatpush.msra.mxu0 0.0
      %421 = vmatpush.msra.mxu0 %v346
      %422 = vmatpush.msra.mxu0 %v345
      %423 = vmatmul.f32.gmra.mxu0 %v396
      %v424 = vpop.f32.mrf.mxu0
      %v425 = vadd.f32 %v384, %v424
      %426 = vmatmul.f32.gmra.mxu0 %v399
      %v427 = vpop.f32.mrf.mxu0
      %v428 = vadd.f32 %v387, %v427
      %429 = vmatmul.f32.gmra.mxu0 %v402
      %v430 = vpop.f32.mrf.mxu0
      %v431 = vadd.f32 %v390, %v430
      %432 = vmatmul.f32.gmra.mxu0 %v405
      %v433 = vpop.f32.mrf.mxu0
      %v434 = vadd.f32 %v393, %v433
      %435 = vdwg.mxu0
      %v436 = vld [vmem:[%s4] sm:$0xff]
      %v437 = vld [vmem:[%s4 + $0x8] sm:$0xff]
      %v438 = vld [vmem:[%s4 + $0x10] sm:$0xff]
      %v439 = vld [vmem:[%s4 + $0x18] sm:$0xff]
      %v440 = vld [vmem:[%s5] sm:$0xff]
      %v441 = vld [vmem:[%s5 + $0x8] sm:$0xff]
      %v442 = vld [vmem:[%s5 + $0x10] sm:$0xff]
      %v443 = vld [vmem:[%s5 + $0x18] sm:$0xff]
      %445 = vset.pattern.permute.xlu0 0
      %446 = vperm.xlu0 %445, %v440
      %v447 = vpop.permute.xlu0 %446
      %450 = vset.pattern.permute.xlu0 0
      %451 = vperm.xlu0 %450, %v441
      %v452 = vpop.permute.xlu0 %451
      %455 = vset.pattern.permute.xlu0 0
      %456 = vperm.xlu0 %455, %v442
      %v457 = vpop.permute.xlu0 %456
      %460 = vset.pattern.permute.xlu0 0
      %461 = vperm.xlu0 %460, %v443
      %v462 = vpop.permute.xlu0 %461
      %vm464 = vcmask 261120
      %v466 = vsel %vm464, %v436, 0
      %v469 = vsel %vm464, %v437, 0
      %v472 = vsel %vm464, %v438, 0
      %v475 = vsel %vm464, %v439, 0
      %477 = vmatpush.msra.mxu0 0.0
      %478 = vmatpush.msra.mxu0 0.0
      %479 = vmatpush.msra.mxu0 0.0
      %480 = vmatpush.msra.mxu0 0.0
      %481 = vmatpush.msra.mxu0 0.0
      %482 = vmatpush.msra.mxu0 0.0
      %483 = vmatpush.msra.mxu0 0.0
      %484 = vmatpush.msra.mxu0 0.0
      %485 = vmatpush.msra.mxu0 0.0
      %486 = vmatpush.msra.mxu0 0.0
      %487 = vmatpush.msra.mxu0 0.0
      %488 = vmatpush.msra.mxu0 0.0
      %489 = vmatpush.msra.mxu0 %v434
      %490 = vmatpush.msra.mxu0 %v431
      %491 = vmatpush.msra.mxu0 %v428
      %492 = vmatpush.msra.mxu0 %v425
      %493 = vmatmul.f32.gmra.mxu0 %v466
      %v494 = vpop.f32.mrf.mxu0
      %v495 = vadd.f32 %v447, %v494
      %496 = vmatmul.f32.gmra.mxu0 %v469
      %v497 = vpop.f32.mrf.mxu0
      %v498 = vadd.f32 %v452, %v497
      %499 = vmatmul.f32.gmra.mxu0 %v472
      %v500 = vpop.f32.mrf.mxu0
      %v501 = vadd.f32 %v457, %v500
      %502 = vmatmul.f32.gmra.mxu0 %v475
      %v503 = vpop.f32.mrf.mxu0
      %v504 = vadd.f32 %v462, %v503
      %505 = vdwg.mxu0
      %vm506 = vcmask 523264
      %507 = vst.msk [vmem:[#allocation2] sm:$0xff] %vm506, %v495
      %508 = vst.msk [vmem:[#allocation2 + $0x8] sm:$0xff] %vm506, %v498
      %509 = vst.msk [vmem:[#allocation2 + $0x10] sm:$0xff] %vm506, %v501
      %510 = vst.msk [vmem:[#allocation2 + $0x18] sm:$0xff] %vm506, %v504
      %v511 = vld [vmem:[#allocation2] sm:$0xff]
      %v512 = vld [vmem:[#allocation2 + $0x8] sm:$0xff]
      %v513 = vld [vmem:[#allocation2 + $0x10] sm:$0xff]
      %v514 = vld [vmem:[#allocation2 + $0x18] sm:$0xff]
      %v515 = vld [vmem:[%s6] sm:$0xff]
      %s516 = scalar_lea.vmem %s6, 8
      %v517 = vld [vmem:[%s516] sm:$0xff]
      %vm518 = vcmask 64512
      %v520 = vsel %vm518, %v512, 0
      %522 = vmatpush.msra.mxu0 0.0
      %523 = vmatpush.msra.mxu0 0.0
      %524 = vmatpush.msra.mxu0 0.0
      %525 = vmatpush.msra.mxu0 0.0
      %526 = vmatpush.msra.mxu0 0.0
      %527 = vmatpush.msra.mxu0 0.0
      %528 = vmatpush.msra.mxu0 0.0
      %529 = vmatpush.msra.mxu0 0.0
      %530 = vmatpush.msra.mxu0 0.0
      %531 = vmatpush.msra.mxu0 0.0
      %532 = vmatpush.msra.mxu0 0.0
      %533 = vmatpush.msra.mxu0 0.0
      %534 = vmatpush.msra.mxu0 0.0
      %535 = vmatpush.msra.mxu0 0.0
      %536 = vmatpush.msra.mxu0 0.0
      %537 = vmatpush.msra.mxu0 %v517
      %538 = vmatmul.f32.gmra.mxu0 %v520
      %v539 = vpop.f32.mrf.mxu0
      %v540 = vadd.f32 0.0, %v539
      %541 = vdwg.mxu0
      %v543 = vsel %vm518, %v511, 0
      %545 = vmatpush.msra.mxu0 0.0
      %546 = vmatpush.msra.mxu0 0.0
      %547 = vmatpush.msra.mxu0 0.0
      %548 = vmatpush.msra.mxu0 0.0
      %549 = vmatpush.msra.mxu0 0.0
      %550 = vmatpush.msra.mxu0 0.0
      %551 = vmatpush.msra.mxu0 0.0
      %552 = vmatpush.msra.mxu0 0.0
      %553 = vmatpush.msra.mxu0 0.0
      %554 = vmatpush.msra.mxu0 0.0
      %555 = vmatpush.msra.mxu0 0.0
      %556 = vmatpush.msra.mxu0 0.0
      %557 = vmatpush.msra.mxu0 0.0
      %558 = vmatpush.msra.mxu0 0.0
      %559 = vmatpush.msra.mxu0 0.0
      %560 = vmatpush.msra.mxu0 %v515
      %561 = vmatmul.f32.gmra.mxu0 %v543
      %v562 = vpop.f32.mrf.mxu0
      %v563 = vadd.f32 %v540, %v562
      %564 = vdwg.mxu0
      %v566 = vsel %vm518, %v514, 0
      %568 = vmatpush.msra.mxu0 0.0
      %569 = vmatpush.msra.mxu0 0.0
      %570 = vmatpush.msra.mxu0 0.0
      %571 = vmatpush.msra.mxu0 0.0
      %572 = vmatpush.msra.mxu0 0.0
      %573 = vmatpush.msra.mxu0 0.0
      %574 = vmatpush.msra.mxu0 0.0
      %575 = vmatpush.msra.mxu0 0.0
      %576 = vmatpush.msra.mxu0 0.0
      %577 = vmatpush.msra.mxu0 0.0
      %578 = vmatpush.msra.mxu0 0.0
      %579 = vmatpush.msra.mxu0 0.0
      %580 = vmatpush.msra.mxu0 0.0
      %581 = vmatpush.msra.mxu0 0.0
      %582 = vmatpush.msra.mxu0 0.0
      %583 = vmatpush.msra.mxu0 %v517
      %584 = vmatmul.f32.gmra.mxu0 %v566
      %v585 = vpop.f32.mrf.mxu0
      %v586 = vadd.f32 0.0, %v585
      %587 = vdwg.mxu0
      %v589 = vsel %vm518, %v513, 0
      %591 = vmatpush.msra.mxu0 0.0
      %592 = vmatpush.msra.mxu0 0.0
      %593 = vmatpush.msra.mxu0 0.0
      %594 = vmatpush.msra.mxu0 0.0
      %595 = vmatpush.msra.mxu0 0.0
      %596 = vmatpush.msra.mxu0 0.0
      %597 = vmatpush.msra.mxu0 0.0
      %598 = vmatpush.msra.mxu0 0.0
      %599 = vmatpush.msra.mxu0 0.0
      %600 = vmatpush.msra.mxu0 0.0
      %601 = vmatpush.msra.mxu0 0.0
      %602 = vmatpush.msra.mxu0 0.0
      %603 = vmatpush.msra.mxu0 0.0
      %604 = vmatpush.msra.mxu0 0.0
      %605 = vmatpush.msra.mxu0 0.0
      %606 = vmatpush.msra.mxu0 %v515
      %607 = vmatmul.f32.gmra.mxu0 %v589
      %v608 = vpop.f32.mrf.mxu0
      %v609 = vadd.f32 %v586, %v608
      %610 = vdwg.mxu0
      %612 = vrot.lane.b32.xlu0 %v609, 16
      %v613 = vpop.permute.xlu0 %612
      %v615 = vsel %vm353, %v563, %v613
      %v617 = vrot.slane %v615, 1
      %v618 = vrot.slane %v615, 2
      %v619 = vrot.slane %v615, 3
      %v620 = vrot.slane %v615, 4
      %v621 = vrot.slane %v615, 5
      %v622 = vrot.slane %v615, 6
      %v623 = vrot.slane %v615, 7
      %vm631 = vcmask 253952
      %632 = vst.msk [vmem:[%s340] sm:$0x1] %vm631, %v615
      %633 = vst.msk [vmem:[%s340 + $0x8] sm:$0x1] %vm631, %v617
      %634 = vst.msk [vmem:[%s340 + $0x10] sm:$0x1] %vm631, %v618
      %635 = vst.msk [vmem:[%s340 + $0x18] sm:$0x1] %vm631, %v619
      %636 = vst.msk [vmem:[%s340 + $0x20] sm:$0x1] %vm631, %v620
      %637 = vst.msk [vmem:[%s340 + $0x28] sm:$0x1] %vm631, %v621
      %638 = vst.msk [vmem:[%s340 + $0x30] sm:$0x1] %vm631, %v622
      %639 = vst.msk [vmem:[%s340 + $0x38] sm:$0x1] %vm631, %v623
      %v640 = vld [vmem:[#allocation2] sm:$0xff]
      %v641 = vld [vmem:[#allocation2 + $0x8] sm:$0xff]
      %v642 = vld [vmem:[#allocation2 + $0x10] sm:$0xff]
      %v643 = vld [vmem:[#allocation2 + $0x18] sm:$0xff]
      %v644 = vld [vmem:[%s6] sm:$0xff]
      %v645 = vld [vmem:[%s516] sm:$0xff]
      %647 = vrot.lane.b32.xlu0 %v641, 120
      %v648 = vpop.permute.xlu0 %647
      %v649 = vsel %vm518, %v648, 0
      %651 = vmatpush.msra.mxu0 0.0
      %652 = vmatpush.msra.mxu0 0.0
      %653 = vmatpush.msra.mxu0 0.0
      %654 = vmatpush.msra.mxu0 0.0
      %655 = vmatpush.msra.mxu0 0.0
      %656 = vmatpush.msra.mxu0 0.0
      %657 = vmatpush.msra.mxu0 0.0
      %658 = vmatpush.msra.mxu0 0.0
      %659 = vmatpush.msra.mxu0 0.0
      %660 = vmatpush.msra.mxu0 0.0
      %661 = vmatpush.msra.mxu0 0.0
      %662 = vmatpush.msra.mxu0 0.0
      %663 = vmatpush.msra.mxu0 0.0
      %664 = vmatpush.msra.mxu0 0.0
      %665 = vmatpush.msra.mxu0 0.0
      %666 = vmatpush.msra.mxu0 %v645
      %667 = vmatmul.f32.gmra.mxu0 %v649
      %v668 = vpop.f32.mrf.mxu0
      %v669 = vadd.f32 0.0, %v668
      %670 = vdwg.mxu0
      %672 = vrot.lane.b32.xlu0 %v640, 120
      %v673 = vpop.permute.xlu0 %672
      %v674 = vsel %vm518, %v673, 0
      %676 = vmatpush.msra.mxu0 0.0
      %677 = vmatpush.msra.mxu0 0.0
      %678 = vmatpush.msra.mxu0 0.0
      %679 = vmatpush.msra.mxu0 0.0
      %680 = vmatpush.msra.mxu0 0.0
      %681 = vmatpush.msra.mxu0 0.0
      %682 = vmatpush.msra.mxu0 0.0
      %683 = vmatpush.msra.mxu0 0.0
      %684 = vmatpush.msra.mxu0 0.0
      %685 = vmatpush.msra.mxu0 0.0
      %686 = vmatpush.msra.mxu0 0.0
      %687 = vmatpush.msra.mxu0 0.0
      %688 = vmatpush.msra.mxu0 0.0
      %689 = vmatpush.msra.mxu0 0.0
      %690 = vmatpush.msra.mxu0 0.0
      %691 = vmatpush.msra.mxu0 %v644
      %692 = vmatmul.f32.gmra.mxu0 %v674
      %v693 = vpop.f32.mrf.mxu0
      %v694 = vadd.f32 %v669, %v693
      %695 = vdwg.mxu0
      %697 = vrot.lane.b32.xlu0 %v643, 120
      %v698 = vpop.permute.xlu0 %697
      %v699 = vsel %vm518, %v698, 0
      %701 = vmatpush.msra.mxu0 0.0
      %702 = vmatpush.msra.mxu0 0.0
      %703 = vmatpush.msra.mxu0 0.0
      %704 = vmatpush.msra.mxu0 0.0
      %705 = vmatpush.msra.mxu0 0.0
      %706 = vmatpush.msra.mxu0 0.0
      %707 = vmatpush.msra.mxu0 0.0
      %708 = vmatpush.msra.mxu0 0.0
      %709 = vmatpush.msra.mxu0 0.0
      %710 = vmatpush.msra.mxu0 0.0
      %711 = vmatpush.msra.mxu0 0.0
      %712 = vmatpush.msra.mxu0 0.0
      %713 = vmatpush.msra.mxu0 0.0
      %714 = vmatpush.msra.mxu0 0.0
      %715 = vmatpush.msra.mxu0 0.0
      %716 = vmatpush.msra.mxu0 %v645
      %717 = vmatmul.f32.gmra.mxu0 %v699
      %v718 = vpop.f32.mrf.mxu0
      %v719 = vadd.f32 0.0, %v718
      %720 = vdwg.mxu0
      %722 = vrot.lane.b32.xlu0 %v642, 120
      %v723 = vpop.permute.xlu0 %722
      %v724 = vsel %vm518, %v723, 0
      %726 = vmatpush.msra.mxu0 0.0
      %727 = vmatpush.msra.mxu0 0.0
      %728 = vmatpush.msra.mxu0 0.0
      %729 = vmatpush.msra.mxu0 0.0
      %730 = vmatpush.msra.mxu0 0.0
      %731 = vmatpush.msra.mxu0 0.0
      %732 = vmatpush.msra.mxu0 0.0
      %733 = vmatpush.msra.mxu0 0.0
      %734 = vmatpush.msra.mxu0 0.0
      %735 = vmatpush.msra.mxu0 0.0
      %736 = vmatpush.msra.mxu0 0.0
      %737 = vmatpush.msra.mxu0 0.0
      %738 = vmatpush.msra.mxu0 0.0
      %739 = vmatpush.msra.mxu0 0.0
      %740 = vmatpush.msra.mxu0 0.0
      %741 = vmatpush.msra.mxu0 %v644
      %742 = vmatmul.f32.gmra.mxu0 %v724
      %v743 = vpop.f32.mrf.mxu0
      %v744 = vadd.f32 %v719, %v743
      %745 = vdwg.mxu0
      %747 = vrot.lane.b32.xlu0 %v744, 16
      %v748 = vpop.permute.xlu0 %747
      %v750 = vsel %vm353, %v694, %v748
      %v752 = vrot.slane %v750, 1
      %v753 = vrot.slane %v750, 2
      %v754 = vrot.slane %v750, 3
      %v755 = vrot.slane %v750, 4
      %v756 = vrot.slane %v750, 5
      %v757 = vrot.slane %v750, 6
      %v758 = vrot.slane %v750, 7
      %766 = vst.msk [vmem:[%s340 + $0x1] sm:$0x1] %vm631, %v750
      %767 = vst.msk [vmem:[%s340 + $0x9] sm:$0x1] %vm631, %v752
      %768 = vst.msk [vmem:[%s340 + $0x11] sm:$0x1] %vm631, %v753
      %769 = vst.msk [vmem:[%s340 + $0x19] sm:$0x1] %vm631, %v754
      %770 = vst.msk [vmem:[%s340 + $0x21] sm:$0x1] %vm631, %v755
      %771 = vst.msk [vmem:[%s340 + $0x29] sm:$0x1] %vm631, %v756
      %772 = vst.msk [vmem:[%s340 + $0x31] sm:$0x1] %vm631, %v757
      %773 = vst.msk [vmem:[%s340 + $0x39] sm:$0x1] %vm631, %v758
      %v774 = vld [vmem:[#allocation2] sm:$0xff]
      %v775 = vld [vmem:[#allocation2 + $0x8] sm:$0xff]
      %v776 = vld [vmem:[#allocation2 + $0x10] sm:$0xff]
      %v777 = vld [vmem:[#allocation2 + $0x18] sm:$0xff]
      %v778 = vld [vmem:[%s6] sm:$0xff]
      %v779 = vld [vmem:[%s516] sm:$0xff]
      %781 = vrot.lane.b32.xlu0 %v775, 112
      %v782 = vpop.permute.xlu0 %781
      %v783 = vsel %vm518, %v782, 0
      %785 = vmatpush.msra.mxu0 0.0
      %786 = vmatpush.msra.mxu0 0.0
      %787 = vmatpush.msra.mxu0 0.0
      %788 = vmatpush.msra.mxu0 0.0
      %789 = vmatpush.msra.mxu0 0.0
      %790 = vmatpush.msra.mxu0 0.0
      %791 = vmatpush.msra.mxu0 0.0
      %792 = vmatpush.msra.mxu0 0.0
      %793 = vmatpush.msra.mxu0 0.0
      %794 = vmatpush.msra.mxu0 0.0
      %795 = vmatpush.msra.mxu0 0.0
      %796 = vmatpush.msra.mxu0 0.0
      %797 = vmatpush.msra.mxu0 0.0
      %798 = vmatpush.msra.mxu0 0.0
      %799 = vmatpush.msra.mxu0 0.0
      %800 = vmatpush.msra.mxu0 %v779
      %801 = vmatmul.f32.gmra.mxu0 %v783
      %v802 = vpop.f32.mrf.mxu0
      %v803 = vadd.f32 0.0, %v802
      %804 = vdwg.mxu0
      %806 = vrot.lane.b32.xlu0 %v774, 112
      %v807 = vpop.permute.xlu0 %806
      %v808 = vsel %vm518, %v807, 0
      %810 = vmatpush.msra.mxu0 0.0
      %811 = vmatpush.msra.mxu0 0.0
      %812 = vmatpush.msra.mxu0 0.0
      %813 = vmatpush.msra.mxu0 0.0
      %814 = vmatpush.msra.mxu0 0.0
      %815 = vmatpush.msra.mxu0 0.0
      %816 = vmatpush.msra.mxu0 0.0
      %817 = vmatpush.msra.mxu0 0.0
      %818 = vmatpush.msra.mxu0 0.0
      %819 = vmatpush.msra.mxu0 0.0
      %820 = vmatpush.msra.mxu0 0.0
      %821 = vmatpush.msra.mxu0 0.0
      %822 = vmatpush.msra.mxu0 0.0
      %823 = vmatpush.msra.mxu0 0.0
      %824 = vmatpush.msra.mxu0 0.0
      %825 = vmatpush.msra.mxu0 %v778
      %826 = vmatmul.f32.gmra.mxu0 %v808
      %v827 = vpop.f32.mrf.mxu0
      %v828 = vadd.f32 %v803, %v827
      %829 = vdwg.mxu0
      %831 = vrot.lane.b32.xlu0 %v777, 112
      %v832 = vpop.permute.xlu0 %831
      %v833 = vsel %vm518, %v832, 0
      %835 = vmatpush.msra.mxu0 0.0
      %836 = vmatpush.msra.mxu0 0.0
      %837 = vmatpush.msra.mxu0 0.0
      %838 = vmatpush.msra.mxu0 0.0
      %839 = vmatpush.msra.mxu0 0.0
      %840 = vmatpush.msra.mxu0 0.0
      %841 = vmatpush.msra.mxu0 0.0
      %842 = vmatpush.msra.mxu0 0.0
      %843 = vmatpush.msra.mxu0 0.0
      %844 = vmatpush.msra.mxu0 0.0
      %845 = vmatpush.msra.mxu0 0.0
      %846 = vmatpush.msra.mxu0 0.0
      %847 = vmatpush.msra.mxu0 0.0
      %848 = vmatpush.msra.mxu0 0.0
      %849 = vmatpush.msra.mxu0 0.0
      %850 = vmatpush.msra.mxu0 %v779
      %851 = vmatmul.f32.gmra.mxu0 %v833
      %v852 = vpop.f32.mrf.mxu0
      %v853 = vadd.f32 0.0, %v852
      %854 = vdwg.mxu0
      %856 = vrot.lane.b32.xlu0 %v776, 112
      %v857 = vpop.permute.xlu0 %856
      %v858 = vsel %vm518, %v857, 0
      %860 = vmatpush.msra.mxu0 0.0
      %861 = vmatpush.msra.mxu0 0.0
      %862 = vmatpush.msra.mxu0 0.0
      %863 = vmatpush.msra.mxu0 0.0
      %864 = vmatpush.msra.mxu0 0.0
      %865 = vmatpush.msra.mxu0 0.0
      %866 = vmatpush.msra.mxu0 0.0
      %867 = vmatpush.msra.mxu0 0.0
      %868 = vmatpush.msra.mxu0 0.0
      %869 = vmatpush.msra.mxu0 0.0
      %870 = vmatpush.msra.mxu0 0.0
      %871 = vmatpush.msra.mxu0 0.0
      %872 = vmatpush.msra.mxu0 0.0
      %873 = vmatpush.msra.mxu0 0.0
      %874 = vmatpush.msra.mxu0 0.0
      %875 = vmatpush.msra.mxu0 %v778
      %876 = vmatmul.f32.gmra.mxu0 %v858
      %v877 = vpop.f32.mrf.mxu0
      %v878 = vadd.f32 %v853, %v877
      %879 = vdwg.mxu0
      %881 = vrot.lane.b32.xlu0 %v878, 16
      %v882 = vpop.permute.xlu0 %881
      %v884 = vsel %vm353, %v828, %v882
      %v886 = vrot.slane %v884, 1
      %v887 = vrot.slane %v884, 2
      %v888 = vrot.slane %v884, 3
      %v889 = vrot.slane %v884, 4
      %v890 = vrot.slane %v884, 5
      %v891 = vrot.slane %v884, 6
      %v892 = vrot.slane %v884, 7
      %900 = vst.msk [vmem:[%s340 + $0x2] sm:$0x1] %vm631, %v884
      %901 = vst.msk [vmem:[%s340 + $0xa] sm:$0x1] %vm631, %v886
      %902 = vst.msk [vmem:[%s340 + $0x12] sm:$0x1] %vm631, %v887
      %903 = vst.msk [vmem:[%s340 + $0x1a] sm:$0x1] %vm631, %v888
      %904 = vst.msk [vmem:[%s340 + $0x22] sm:$0x1] %vm631, %v889
      %905 = vst.msk [vmem:[%s340 + $0x2a] sm:$0x1] %vm631, %v890
      %906 = vst.msk [vmem:[%s340 + $0x32] sm:$0x1] %vm631, %v891
      %907 = vst.msk [vmem:[%s340 + $0x3a] sm:$0x1] %vm631, %v892
      %v908 = vld [vmem:[#allocation2] sm:$0xff]
      %v909 = vld [vmem:[#allocation2 + $0x8] sm:$0xff]
      %v910 = vld [vmem:[#allocation2 + $0x10] sm:$0xff]
      %v911 = vld [vmem:[#allocation2 + $0x18] sm:$0xff]
      %v912 = vld [vmem:[%s6] sm:$0xff]
      %v913 = vld [vmem:[%s516] sm:$0xff]
      %915 = vrot.lane.b32.xlu0 %v909, 104
      %v916 = vpop.permute.xlu0 %915
      %v917 = vsel %vm518, %v916, 0
      %919 = vmatpush.msra.mxu0 0.0
      %920 = vmatpush.msra.mxu0 0.0
      %921 = vmatpush.msra.mxu0 0.0
      %922 = vmatpush.msra.mxu0 0.0
      %923 = vmatpush.msra.mxu0 0.0
      %924 = vmatpush.msra.mxu0 0.0
      %925 = vmatpush.msra.mxu0 0.0
      %926 = vmatpush.msra.mxu0 0.0
      %927 = vmatpush.msra.mxu0 0.0
      %928 = vmatpush.msra.mxu0 0.0
      %929 = vmatpush.msra.mxu0 0.0
      %930 = vmatpush.msra.mxu0 0.0
      %931 = vmatpush.msra.mxu0 0.0
      %932 = vmatpush.msra.mxu0 0.0
      %933 = vmatpush.msra.mxu0 0.0
      %934 = vmatpush.msra.mxu0 %v913
      %935 = vmatmul.f32.gmra.mxu0 %v917
      %v936 = vpop.f32.mrf.mxu0
      %v937 = vadd.f32 0.0, %v936
      %938 = vdwg.mxu0
      %940 = vrot.lane.b32.xlu0 %v908, 104
      %v941 = vpop.permute.xlu0 %940
      %v942 = vsel %vm518, %v941, 0
      %944 = vmatpush.msra.mxu0 0.0
      %945 = vmatpush.msra.mxu0 0.0
      %946 = vmatpush.msra.mxu0 0.0
      %947 = vmatpush.msra.mxu0 0.0
      %948 = vmatpush.msra.mxu0 0.0
      %949 = vmatpush.msra.mxu0 0.0
      %950 = vmatpush.msra.mxu0 0.0
      %951 = vmatpush.msra.mxu0 0.0
      %952 = vmatpush.msra.mxu0 0.0
      %953 = vmatpush.msra.mxu0 0.0
      %954 = vmatpush.msra.mxu0 0.0
      %955 = vmatpush.msra.mxu0 0.0
      %956 = vmatpush.msra.mxu0 0.0
      %957 = vmatpush.msra.mxu0 0.0
      %958 = vmatpush.msra.mxu0 0.0
      %959 = vmatpush.msra.mxu0 %v912
      %960 = vmatmul.f32.gmra.mxu0 %v942
      %v961 = vpop.f32.mrf.mxu0
      %v962 = vadd.f32 %v937, %v961
      %963 = vdwg.mxu0
      %965 = vrot.lane.b32.xlu0 %v911, 104
      %v966 = vpop.permute.xlu0 %965
      %v967 = vsel %vm518, %v966, 0
      %969 = vmatpush.msra.mxu0 0.0
      %970 = vmatpush.msra.mxu0 0.0
      %971 = vmatpush.msra.mxu0 0.0
      %972 = vmatpush.msra.mxu0 0.0
      %973 = vmatpush.msra.mxu0 0.0
      %974 = vmatpush.msra.mxu0 0.0
      %975 = vmatpush.msra.mxu0 0.0
      %976 = vmatpush.msra.mxu0 0.0
      %977 = vmatpush.msra.mxu0 0.0
      %978 = vmatpush.msra.mxu0 0.0
      %979 = vmatpush.msra.mxu0 0.0
      %980 = vmatpush.msra.mxu0 0.0
      %981 = vmatpush.msra.mxu0 0.0
      %982 = vmatpush.msra.mxu0 0.0
      %983 = vmatpush.msra.mxu0 0.0
      %984 = vmatpush.msra.mxu0 %v913
      %985 = vmatmul.f32.gmra.mxu0 %v967
      %v986 = vpop.f32.mrf.mxu0
      %v987 = vadd.f32 0.0, %v986
      %988 = vdwg.mxu0
      %990 = vrot.lane.b32.xlu0 %v910, 104
      %v991 = vpop.permute.xlu0 %990
      %v992 = vsel %vm518, %v991, 0
      %994 = vmatpush.msra.mxu0 0.0
      %995 = vmatpush.msra.mxu0 0.0
      %996 = vmatpush.msra.mxu0 0.0
      %997 = vmatpush.msra.mxu0 0.0
      %998 = vmatpush.msra.mxu0 0.0
      %999 = vmatpush.msra.mxu0 0.0
      %1000 = vmatpush.msra.mxu0 0.0
      %1001 = vmatpush.msra.mxu0 0.0
      %1002 = vmatpush.msra.mxu0 0.0
      %1003 = vmatpush.msra.mxu0 0.0
      %1004 = vmatpush.msra.mxu0 0.0
      %1005 = vmatpush.msra.mxu0 0.0
      %1006 = vmatpush.msra.mxu0 0.0
      %1007 = vmatpush.msra.mxu0 0.0
      %1008 = vmatpush.msra.mxu0 0.0
      %1009 = vmatpush.msra.mxu0 %v912
      %1010 = vmatmul.f32.gmra.mxu0 %v992
      %v1011 = vpop.f32.mrf.mxu0
      %v1012 = vadd.f32 %v987, %v1011
      %1013 = vdwg.mxu0
      %1015 = vrot.lane.b32.xlu0 %v1012, 16
      %v1016 = vpop.permute.xlu0 %1015
      %v1018 = vsel %vm353, %v962, %v1016
      %v1020 = vrot.slane %v1018, 1
      %v1021 = vrot.slane %v1018, 2
      %v1022 = vrot.slane %v1018, 3
      %v1023 = vrot.slane %v1018, 4
      %v1024 = vrot.slane %v1018, 5
      %v1025 = vrot.slane %v1018, 6
      %v1026 = vrot.slane %v1018, 7
      %1034 = vst.msk [vmem:[%s340 + $0x3] sm:$0x1] %vm631, %v1018
      %1035 = vst.msk [vmem:[%s340 + $0xb] sm:$0x1] %vm631, %v1020
      %1036 = vst.msk [vmem:[%s340 + $0x13] sm:$0x1] %vm631, %v1021
      %1037 = vst.msk [vmem:[%s340 + $0x1b] sm:$0x1] %vm631, %v1022
      %1038 = vst.msk [vmem:[%s340 + $0x23] sm:$0x1] %vm631, %v1023
      %1039 = vst.msk [vmem:[%s340 + $0x2b] sm:$0x1] %vm631, %v1024
      %1040 = vst.msk [vmem:[%s340 + $0x33] sm:$0x1] %vm631, %v1025
      %1041 = vst.msk [vmem:[%s340 + $0x3b] sm:$0x1] %vm631, %v1026
      %v1042 = vld [vmem:[#allocation2] sm:$0xff]
      %v1043 = vld [vmem:[#allocation2 + $0x8] sm:$0xff]
      %v1044 = vld [vmem:[#allocation2 + $0x10] sm:$0xff]
      %v1045 = vld [vmem:[#allocation2 + $0x18] sm:$0xff]
      %v1046 = vld [vmem:[%s6] sm:$0xff]
      %v1047 = vld [vmem:[%s516] sm:$0xff]
      %1049 = vrot.lane.b32.xlu0 %v1043, 96
      %v1050 = vpop.permute.xlu0 %1049
      %v1051 = vsel %vm518, %v1050, 0
      %1053 = vmatpush.msra.mxu0 0.0
      %1054 = vmatpush.msra.mxu0 0.0
      %1055 = vmatpush.msra.mxu0 0.0
      %1056 = vmatpush.msra.mxu0 0.0
      %1057 = vmatpush.msra.mxu0 0.0
      %1058 = vmatpush.msra.mxu0 0.0
      %1059 = vmatpush.msra.mxu0 0.0
      %1060 = vmatpush.msra.mxu0 0.0
      %1061 = vmatpush.msra.mxu0 0.0
      %1062 = vmatpush.msra.mxu0 0.0
      %1063 = vmatpush.msra.mxu0 0.0
      %1064 = vmatpush.msra.mxu0 0.0
      %1065 = vmatpush.msra.mxu0 0.0
      %1066 = vmatpush.msra.mxu0 0.0
      %1067 = vmatpush.msra.mxu0 0.0
      %1068 = vmatpush.msra.mxu0 %v1047
      %1069 = vmatmul.f32.gmra.mxu0 %v1051
      %v1070 = vpop.f32.mrf.mxu0
      %v1071 = vadd.f32 0.0, %v1070
      %1072 = vdwg.mxu0
      %1074 = vrot.lane.b32.xlu0 %v1042, 96
      %v1075 = vpop.permute.xlu0 %1074
      %v1076 = vsel %vm518, %v1075, 0
      %1078 = vmatpush.msra.mxu0 0.0
      %1079 = vmatpush.msra.mxu0 0.0
      %1080 = vmatpush.msra.mxu0 0.0
      %1081 = vmatpush.msra.mxu0 0.0
      %1082 = vmatpush.msra.mxu0 0.0
      %1083 = vmatpush.msra.mxu0 0.0
      %1084 = vmatpush.msra.mxu0 0.0
      %1085 = vmatpush.msra.mxu0 0.0
      %1086 = vmatpush.msra.mxu0 0.0
      %1087 = vmatpush.msra.mxu0 0.0
      %1088 = vmatpush.msra.mxu0 0.0
      %1089 = vmatpush.msra.mxu0 0.0
      %1090 = vmatpush.msra.mxu0 0.0
      %1091 = vmatpush.msra.mxu0 0.0
      %1092 = vmatpush.msra.mxu0 0.0
      %1093 = vmatpush.msra.mxu0 %v1046
      %1094 = vmatmul.f32.gmra.mxu0 %v1076
      %v1095 = vpop.f32.mrf.mxu0
      %v1096 = vadd.f32 %v1071, %v1095
      %1097 = vdwg.mxu0
      %1099 = vrot.lane.b32.xlu0 %v1045, 96
      %v1100 = vpop.permute.xlu0 %1099
      %v1101 = vsel %vm518, %v1100, 0
      %1103 = vmatpush.msra.mxu0 0.0
      %1104 = vmatpush.msra.mxu0 0.0
      %1105 = vmatpush.msra.mxu0 0.0
      %1106 = vmatpush.msra.mxu0 0.0
      %1107 = vmatpush.msra.mxu0 0.0
      %1108 = vmatpush.msra.mxu0 0.0
      %1109 = vmatpush.msra.mxu0 0.0
      %1110 = vmatpush.msra.mxu0 0.0
      %1111 = vmatpush.msra.mxu0 0.0
      %1112 = vmatpush.msra.mxu0 0.0
      %1113 = vmatpush.msra.mxu0 0.0
      %1114 = vmatpush.msra.mxu0 0.0
      %1115 = vmatpush.msra.mxu0 0.0
      %1116 = vmatpush.msra.mxu0 0.0
      %1117 = vmatpush.msra.mxu0 0.0
      %1118 = vmatpush.msra.mxu0 %v1047
      %1119 = vmatmul.f32.gmra.mxu0 %v1101
      %v1120 = vpop.f32.mrf.mxu0
      %v1121 = vadd.f32 0.0, %v1120
      %1122 = vdwg.mxu0
      %1124 = vrot.lane.b32.xlu0 %v1044, 96
      %v1125 = vpop.permute.xlu0 %1124
      %v1126 = vsel %vm518, %v1125, 0
      %1128 = vmatpush.msra.mxu0 0.0
      %1129 = vmatpush.msra.mxu0 0.0
      %1130 = vmatpush.msra.mxu0 0.0
      %1131 = vmatpush.msra.mxu0 0.0
      %1132 = vmatpush.msra.mxu0 0.0
      %1133 = vmatpush.msra.mxu0 0.0
      %1134 = vmatpush.msra.mxu0 0.0
      %1135 = vmatpush.msra.mxu0 0.0
      %1136 = vmatpush.msra.mxu0 0.0
      %1137 = vmatpush.msra.mxu0 0.0
      %1138 = vmatpush.msra.mxu0 0.0
      %1139 = vmatpush.msra.mxu0 0.0
      %1140 = vmatpush.msra.mxu0 0.0
      %1141 = vmatpush.msra.mxu0 0.0
      %1142 = vmatpush.msra.mxu0 0.0
      %1143 = vmatpush.msra.mxu0 %v1046
      %1144 = vmatmul.f32.gmra.mxu0 %v1126
      %v1145 = vpop.f32.mrf.mxu0
      %v1146 = vadd.f32 %v1121, %v1145
      %1147 = vdwg.mxu0
      %1149 = vrot.lane.b32.xlu0 %v1146, 16
      %v1150 = vpop.permute.xlu0 %1149
      %v1152 = vsel %vm353, %v1096, %v1150
      %v1154 = vrot.slane %v1152, 1
      %v1155 = vrot.slane %v1152, 2
      %v1156 = vrot.slane %v1152, 3
      %v1157 = vrot.slane %v1152, 4
      %v1158 = vrot.slane %v1152, 5
      %v1159 = vrot.slane %v1152, 6
      %v1160 = vrot.slane %v1152, 7
      %1168 = vst.msk [vmem:[%s340 + $0x4] sm:$0x1] %vm631, %v1152
      %1169 = vst.msk [vmem:[%s340 + $0xc] sm:$0x1] %vm631, %v1154
      %1170 = vst.msk [vmem:[%s340 + $0x14] sm:$0x1] %vm631, %v1155
      %1171 = vst.msk [vmem:[%s340 + $0x1c] sm:$0x1] %vm631, %v1156
      %1172 = vst.msk [vmem:[%s340 + $0x24] sm:$0x1] %vm631, %v1157
      %1173 = vst.msk [vmem:[%s340 + $0x2c] sm:$0x1] %vm631, %v1158
      %1174 = vst.msk [vmem:[%s340 + $0x34] sm:$0x1] %vm631, %v1159
      %1175 = vst.msk [vmem:[%s340 + $0x3c] sm:$0x1] %vm631, %v1160
      %v1176 = vld [vmem:[#allocation2] sm:$0xff]
      %v1177 = vld [vmem:[#allocation2 + $0x8] sm:$0xff]
      %v1178 = vld [vmem:[#allocation2 + $0x10] sm:$0xff]
      %v1179 = vld [vmem:[#allocation2 + $0x18] sm:$0xff]
      %v1180 = vld [vmem:[%s6] sm:$0xff]
      %v1181 = vld [vmem:[%s516] sm:$0xff]
      %1183 = vrot.lane.b32.xlu0 %v1177, 88
      %v1184 = vpop.permute.xlu0 %1183
      %v1185 = vsel %vm518, %v1184, 0
      %1187 = vmatpush.msra.mxu0 0.0
      %1188 = vmatpush.msra.mxu0 0.0
      %1189 = vmatpush.msra.mxu0 0.0
      %1190 = vmatpush.msra.mxu0 0.0
      %1191 = vmatpush.msra.mxu0 0.0
      %1192 = vmatpush.msra.mxu0 0.0
      %1193 = vmatpush.msra.mxu0 0.0
      %1194 = vmatpush.msra.mxu0 0.0
      %1195 = vmatpush.msra.mxu0 0.0
      %1196 = vmatpush.msra.mxu0 0.0
      %1197 = vmatpush.msra.mxu0 0.0
      %1198 = vmatpush.msra.mxu0 0.0
      %1199 = vmatpush.msra.mxu0 0.0
      %1200 = vmatpush.msra.mxu0 0.0
      %1201 = vmatpush.msra.mxu0 0.0
      %1202 = vmatpush.msra.mxu0 %v1181
      %1203 = vmatmul.f32.gmra.mxu0 %v1185
      %v1204 = vpop.f32.mrf.mxu0
      %v1205 = vadd.f32 0.0, %v1204
      %1206 = vdwg.mxu0
      %1208 = vrot.lane.b32.xlu0 %v1176, 88
      %v1209 = vpop.permute.xlu0 %1208
      %v1210 = vsel %vm518, %v1209, 0
      %1212 = vmatpush.msra.mxu0 0.0
      %1213 = vmatpush.msra.mxu0 0.0
      %1214 = vmatpush.msra.mxu0 0.0
      %1215 = vmatpush.msra.mxu0 0.0
      %1216 = vmatpush.msra.mxu0 0.0
      %1217 = vmatpush.msra.mxu0 0.0
      %1218 = vmatpush.msra.mxu0 0.0
      %1219 = vmatpush.msra.mxu0 0.0
      %1220 = vmatpush.msra.mxu0 0.0
      %1221 = vmatpush.msra.mxu0 0.0
      %1222 = vmatpush.msra.mxu0 0.0
      %1223 = vmatpush.msra.mxu0 0.0
      %1224 = vmatpush.msra.mxu0 0.0
      %1225 = vmatpush.msra.mxu0 0.0
      %1226 = vmatpush.msra.mxu0 0.0
      %1227 = vmatpush.msra.mxu0 %v1180
      %1228 = vmatmul.f32.gmra.mxu0 %v1210
      %v1229 = vpop.f32.mrf.mxu0
      %v1230 = vadd.f32 %v1205, %v1229
      %1231 = vdwg.mxu0
      %1233 = vrot.lane.b32.xlu0 %v1179, 88
      %v1234 = vpop.permute.xlu0 %1233
      %v1235 = vsel %vm518, %v1234, 0
      %1237 = vmatpush.msra.mxu0 0.0
      %1238 = vmatpush.msra.mxu0 0.0
      %1239 = vmatpush.msra.mxu0 0.0
      %1240 = vmatpush.msra.mxu0 0.0
      %1241 = vmatpush.msra.mxu0 0.0
      %1242 = vmatpush.msra.mxu0 0.0
      %1243 = vmatpush.msra.mxu0 0.0
      %1244 = vmatpush.msra.mxu0 0.0
      %1245 = vmatpush.msra.mxu0 0.0
      %1246 = vmatpush.msra.mxu0 0.0
      %1247 = vmatpush.msra.mxu0 0.0
      %1248 = vmatpush.msra.mxu0 0.0
      %1249 = vmatpush.msra.mxu0 0.0
      %1250 = vmatpush.msra.mxu0 0.0
      %1251 = vmatpush.msra.mxu0 0.0
      %1252 = vmatpush.msra.mxu0 %v1181
      %1253 = vmatmul.f32.gmra.mxu0 %v1235
      %v1254 = vpop.f32.mrf.mxu0
      %v1255 = vadd.f32 0.0, %v1254
      %1256 = vdwg.mxu0
      %1258 = vrot.lane.b32.xlu0 %v1178, 88
      %v1259 = vpop.permute.xlu0 %1258
      %v1260 = vsel %vm518, %v1259, 0
      %1262 = vmatpush.msra.mxu0 0.0
      %1263 = vmatpush.msra.mxu0 0.0
      %1264 = vmatpush.msra.mxu0 0.0
      %1265 = vmatpush.msra.mxu0 0.0
      %1266 = vmatpush.msra.mxu0 0.0
      %1267 = vmatpush.msra.mxu0 0.0
      %1268 = vmatpush.msra.mxu0 0.0
      %1269 = vmatpush.msra.mxu0 0.0
      %1270 = vmatpush.msra.mxu0 0.0
      %1271 = vmatpush.msra.mxu0 0.0
      %1272 = vmatpush.msra.mxu0 0.0
      %1273 = vmatpush.msra.mxu0 0.0
      %1274 = vmatpush.msra.mxu0 0.0
      %1275 = vmatpush.msra.mxu0 0.0
      %1276 = vmatpush.msra.mxu0 0.0
      %1277 = vmatpush.msra.mxu0 %v1180
      %1278 = vmatmul.f32.gmra.mxu0 %v1260
      %v1279 = vpop.f32.mrf.mxu0
      %v1280 = vadd.f32 %v1255, %v1279
      %1281 = vdwg.mxu0
      %1283 = vrot.lane.b32.xlu0 %v1280, 16
      %v1284 = vpop.permute.xlu0 %1283
      %v1286 = vsel %vm353, %v1230, %v1284
      %v1288 = vrot.slane %v1286, 1
      %v1289 = vrot.slane %v1286, 2
      %v1290 = vrot.slane %v1286, 3
      %v1291 = vrot.slane %v1286, 4
      %v1292 = vrot.slane %v1286, 5
      %v1293 = vrot.slane %v1286, 6
      %v1294 = vrot.slane %v1286, 7
      %1302 = vst.msk [vmem:[%s340 + $0x5] sm:$0x1] %vm631, %v1286
      %1303 = vst.msk [vmem:[%s340 + $0xd] sm:$0x1] %vm631, %v1288
      %1304 = vst.msk [vmem:[%s340 + $0x15] sm:$0x1] %vm631, %v1289
      %1305 = vst.msk [vmem:[%s340 + $0x1d] sm:$0x1] %vm631, %v1290
      %1306 = vst.msk [vmem:[%s340 + $0x25] sm:$0x1] %vm631, %v1291
      %1307 = vst.msk [vmem:[%s340 + $0x2d] sm:$0x1] %vm631, %v1292
      %1308 = vst.msk [vmem:[%s340 + $0x35] sm:$0x1] %vm631, %v1293
      %1309 = vst.msk [vmem:[%s340 + $0x3d] sm:$0x1] %vm631, %v1294
      %v1310 = vld [vmem:[#allocation2] sm:$0xff]
      %v1311 = vld [vmem:[#allocation2 + $0x8] sm:$0xff]
      %v1312 = vld [vmem:[#allocation2 + $0x10] sm:$0xff]
      %v1313 = vld [vmem:[#allocation2 + $0x18] sm:$0xff]
      %v1314 = vld [vmem:[%s6] sm:$0xff]
      %v1315 = vld [vmem:[%s516] sm:$0xff]
      %1317 = vrot.lane.b32.xlu0 %v1311, 80
      %v1318 = vpop.permute.xlu0 %1317
      %v1319 = vsel %vm518, %v1318, 0
      %1321 = vmatpush.msra.mxu0 0.0
      %1322 = vmatpush.msra.mxu0 0.0
      %1323 = vmatpush.msra.mxu0 0.0
      %1324 = vmatpush.msra.mxu0 0.0
      %1325 = vmatpush.msra.mxu0 0.0
      %1326 = vmatpush.msra.mxu0 0.0
      %1327 = vmatpush.msra.mxu0 0.0
      %1328 = vmatpush.msra.mxu0 0.0
      %1329 = vmatpush.msra.mxu0 0.0
      %1330 = vmatpush.msra.mxu0 0.0
      %1331 = vmatpush.msra.mxu0 0.0
      %1332 = vmatpush.msra.mxu0 0.0
      %1333 = vmatpush.msra.mxu0 0.0
      %1334 = vmatpush.msra.mxu0 0.0
      %1335 = vmatpush.msra.mxu0 0.0
      %1336 = vmatpush.msra.mxu0 %v1315
      %1337 = vmatmul.f32.gmra.mxu0 %v1319
      %v1338 = vpop.f32.mrf.mxu0
      %v1339 = vadd.f32 0.0, %v1338
      %1340 = vdwg.mxu0
      %1342 = vrot.lane.b32.xlu0 %v1310, 80
      %v1343 = vpop.permute.xlu0 %1342
      %v1344 = vsel %vm518, %v1343, 0
      %1346 = vmatpush.msra.mxu0 0.0
      %1347 = vmatpush.msra.mxu0 0.0
      %1348 = vmatpush.msra.mxu0 0.0
      %1349 = vmatpush.msra.mxu0 0.0
      %1350 = vmatpush.msra.mxu0 0.0
      %1351 = vmatpush.msra.mxu0 0.0
      %1352 = vmatpush.msra.mxu0 0.0
      %1353 = vmatpush.msra.mxu0 0.0
      %1354 = vmatpush.msra.mxu0 0.0
      %1355 = vmatpush.msra.mxu0 0.0
      %1356 = vmatpush.msra.mxu0 0.0
      %1357 = vmatpush.msra.mxu0 0.0
      %1358 = vmatpush.msra.mxu0 0.0
      %1359 = vmatpush.msra.mxu0 0.0
      %1360 = vmatpush.msra.mxu0 0.0
      %1361 = vmatpush.msra.mxu0 %v1314
      %1362 = vmatmul.f32.gmra.mxu0 %v1344
      %v1363 = vpop.f32.mrf.mxu0
      %v1364 = vadd.f32 %v1339, %v1363
      %1365 = vdwg.mxu0
      %1367 = vrot.lane.b32.xlu0 %v1313, 80
      %v1368 = vpop.permute.xlu0 %1367
      %v1369 = vsel %vm518, %v1368, 0
      %1371 = vmatpush.msra.mxu0 0.0
      %1372 = vmatpush.msra.mxu0 0.0
      %1373 = vmatpush.msra.mxu0 0.0
      %1374 = vmatpush.msra.mxu0 0.0
      %1375 = vmatpush.msra.mxu0 0.0
      %1376 = vmatpush.msra.mxu0 0.0
      %1377 = vmatpush.msra.mxu0 0.0
      %1378 = vmatpush.msra.mxu0 0.0
      %1379 = vmatpush.msra.mxu0 0.0
      %1380 = vmatpush.msra.mxu0 0.0
      %1381 = vmatpush.msra.mxu0 0.0
      %1382 = vmatpush.msra.mxu0 0.0
      %1383 = vmatpush.msra.mxu0 0.0
      %1384 = vmatpush.msra.mxu0 0.0
      %1385 = vmatpush.msra.mxu0 0.0
      %1386 = vmatpush.msra.mxu0 %v1315
      %1387 = vmatmul.f32.gmra.mxu0 %v1369
      %v1388 = vpop.f32.mrf.mxu0
      %v1389 = vadd.f32 0.0, %v1388
      %1390 = vdwg.mxu0
      %1392 = vrot.lane.b32.xlu0 %v1312, 80
      %v1393 = vpop.permute.xlu0 %1392
      %v1394 = vsel %vm518, %v1393, 0
      %1396 = vmatpush.msra.mxu0 0.0
      %1397 = vmatpush.msra.mxu0 0.0
      %1398 = vmatpush.msra.mxu0 0.0
      %1399 = vmatpush.msra.mxu0 0.0
      %1400 = vmatpush.msra.mxu0 0.0
      %1401 = vmatpush.msra.mxu0 0.0
      %1402 = vmatpush.msra.mxu0 0.0
      %1403 = vmatpush.msra.mxu0 0.0
      %1404 = vmatpush.msra.mxu0 0.0
      %1405 = vmatpush.msra.mxu0 0.0
      %1406 = vmatpush.msra.mxu0 0.0
      %1407 = vmatpush.msra.mxu0 0.0
      %1408 = vmatpush.msra.mxu0 0.0
      %1409 = vmatpush.msra.mxu0 0.0
      %1410 = vmatpush.msra.mxu0 0.0
      %1411 = vmatpush.msra.mxu0 %v1314
      %1412 = vmatmul.f32.gmra.mxu0 %v1394
      %v1413 = vpop.f32.mrf.mxu0
      %v1414 = vadd.f32 %v1389, %v1413
      %1415 = vdwg.mxu0
      %1417 = vrot.lane.b32.xlu0 %v1414, 16
      %v1418 = vpop.permute.xlu0 %1417
      %v1420 = vsel %vm353, %v1364, %v1418
      %v1422 = vrot.slane %v1420, 1
      %v1423 = vrot.slane %v1420, 2
      %v1424 = vrot.slane %v1420, 3
      %v1425 = vrot.slane %v1420, 4
      %v1426 = vrot.slane %v1420, 5
      %v1427 = vrot.slane %v1420, 6
      %v1428 = vrot.slane %v1420, 7
      %1436 = vst.msk [vmem:[%s340 + $0x6] sm:$0x1] %vm631, %v1420
      %1437 = vst.msk [vmem:[%s340 + $0xe] sm:$0x1] %vm631, %v1422
      %1438 = vst.msk [vmem:[%s340 + $0x16] sm:$0x1] %vm631, %v1423
      %1439 = vst.msk [vmem:[%s340 + $0x1e] sm:$0x1] %vm631, %v1424
      %1440 = vst.msk [vmem:[%s340 + $0x26] sm:$0x1] %vm631, %v1425
      %1441 = vst.msk [vmem:[%s340 + $0x2e] sm:$0x1] %vm631, %v1426
      %1442 = vst.msk [vmem:[%s340 + $0x36] sm:$0x1] %vm631, %v1427
      %1443 = vst.msk [vmem:[%s340 + $0x3e] sm:$0x1] %vm631, %v1428
      %v1444 = vld [vmem:[#allocation2] sm:$0xff]
      %v1445 = vld [vmem:[#allocation2 + $0x8] sm:$0xff]
      %v1446 = vld [vmem:[#allocation2 + $0x10] sm:$0xff]
      %v1447 = vld [vmem:[#allocation2 + $0x18] sm:$0xff]
      %v1448 = vld [vmem:[%s6] sm:$0xff]
      %v1449 = vld [vmem:[%s516] sm:$0xff]
      %1451 = vrot.lane.b32.xlu0 %v1445, 72
      %v1452 = vpop.permute.xlu0 %1451
      %v1453 = vsel %vm518, %v1452, 0
      %1455 = vmatpush.msra.mxu0 0.0
      %1456 = vmatpush.msra.mxu0 0.0
      %1457 = vmatpush.msra.mxu0 0.0
      %1458 = vmatpush.msra.mxu0 0.0
      %1459 = vmatpush.msra.mxu0 0.0
      %1460 = vmatpush.msra.mxu0 0.0
      %1461 = vmatpush.msra.mxu0 0.0
      %1462 = vmatpush.msra.mxu0 0.0
      %1463 = vmatpush.msra.mxu0 0.0
      %1464 = vmatpush.msra.mxu0 0.0
      %1465 = vmatpush.msra.mxu0 0.0
      %1466 = vmatpush.msra.mxu0 0.0
      %1467 = vmatpush.msra.mxu0 0.0
      %1468 = vmatpush.msra.mxu0 0.0
      %1469 = vmatpush.msra.mxu0 0.0
      %1470 = vmatpush.msra.mxu0 %v1449
      %1471 = vmatmul.f32.gmra.mxu0 %v1453
      %v1472 = vpop.f32.mrf.mxu0
      %v1473 = vadd.f32 0.0, %v1472
      %1474 = vdwg.mxu0
      %1476 = vrot.lane.b32.xlu0 %v1444, 72
      %v1477 = vpop.permute.xlu0 %1476
      %v1478 = vsel %vm518, %v1477, 0
      %1480 = vmatpush.msra.mxu0 0.0
      %1481 = vmatpush.msra.mxu0 0.0
      %1482 = vmatpush.msra.mxu0 0.0
      %1483 = vmatpush.msra.mxu0 0.0
      %1484 = vmatpush.msra.mxu0 0.0
      %1485 = vmatpush.msra.mxu0 0.0
      %1486 = vmatpush.msra.mxu0 0.0
      %1487 = vmatpush.msra.mxu0 0.0
      %1488 = vmatpush.msra.mxu0 0.0
      %1489 = vmatpush.msra.mxu0 0.0
      %1490 = vmatpush.msra.mxu0 0.0
      %1491 = vmatpush.msra.mxu0 0.0
      %1492 = vmatpush.msra.mxu0 0.0
      %1493 = vmatpush.msra.mxu0 0.0
      %1494 = vmatpush.msra.mxu0 0.0
      %1495 = vmatpush.msra.mxu0 %v1448
      %1496 = vmatmul.f32.gmra.mxu0 %v1478
      %v1497 = vpop.f32.mrf.mxu0
      %v1498 = vadd.f32 %v1473, %v1497
      %1499 = vdwg.mxu0
      %1501 = vrot.lane.b32.xlu0 %v1447, 72
      %v1502 = vpop.permute.xlu0 %1501
      %v1503 = vsel %vm518, %v1502, 0
      %1505 = vmatpush.msra.mxu0 0.0
      %1506 = vmatpush.msra.mxu0 0.0
      %1507 = vmatpush.msra.mxu0 0.0
      %1508 = vmatpush.msra.mxu0 0.0
      %1509 = vmatpush.msra.mxu0 0.0
      %1510 = vmatpush.msra.mxu0 0.0
      %1511 = vmatpush.msra.mxu0 0.0
      %1512 = vmatpush.msra.mxu0 0.0
      %1513 = vmatpush.msra.mxu0 0.0
      %1514 = vmatpush.msra.mxu0 0.0
      %1515 = vmatpush.msra.mxu0 0.0
      %1516 = vmatpush.msra.mxu0 0.0
      %1517 = vmatpush.msra.mxu0 0.0
      %1518 = vmatpush.msra.mxu0 0.0
      %1519 = vmatpush.msra.mxu0 0.0
      %1520 = vmatpush.msra.mxu0 %v1449
      %1521 = vmatmul.f32.gmra.mxu0 %v1503
      %v1522 = vpop.f32.mrf.mxu0
      %v1523 = vadd.f32 0.0, %v1522
      %1524 = vdwg.mxu0
      %1526 = vrot.lane.b32.xlu0 %v1446, 72
      %v1527 = vpop.permute.xlu0 %1526
      %v1528 = vsel %vm518, %v1527, 0
      %1530 = vmatpush.msra.mxu0 0.0
      %1531 = vmatpush.msra.mxu0 0.0
      %1532 = vmatpush.msra.mxu0 0.0
      %1533 = vmatpush.msra.mxu0 0.0
      %1534 = vmatpush.msra.mxu0 0.0
      %1535 = vmatpush.msra.mxu0 0.0
      %1536 = vmatpush.msra.mxu0 0.0
      %1537 = vmatpush.msra.mxu0 0.0
      %1538 = vmatpush.msra.mxu0 0.0
      %1539 = vmatpush.msra.mxu0 0.0
      %1540 = vmatpush.msra.mxu0 0.0
      %1541 = vmatpush.msra.mxu0 0.0
      %1542 = vmatpush.msra.mxu0 0.0
      %1543 = vmatpush.msra.mxu0 0.0
      %1544 = vmatpush.msra.mxu0 0.0
      %1545 = vmatpush.msra.mxu0 %v1448
      %1546 = vmatmul.f32.gmra.mxu0 %v1528
      %v1547 = vpop.f32.mrf.mxu0
      %v1548 = vadd.f32 %v1523, %v1547
      %1549 = vdwg.mxu0
      %1551 = vrot.lane.b32.xlu0 %v1548, 16
      %v1552 = vpop.permute.xlu0 %1551
      %v1554 = vsel %vm353, %v1498, %v1552
      %v1556 = vrot.slane %v1554, 1
      %v1557 = vrot.slane %v1554, 2
      %v1558 = vrot.slane %v1554, 3
      %v1559 = vrot.slane %v1554, 4
      %v1560 = vrot.slane %v1554, 5
      %v1561 = vrot.slane %v1554, 6
      %v1562 = vrot.slane %v1554, 7
      %1570 = vst.msk [vmem:[%s340 + $0x7] sm:$0x1] %vm631, %v1554
      %1571 = vst.msk [vmem:[%s340 + $0xf] sm:$0x1] %vm631, %v1556
      %1572 = vst.msk [vmem:[%s340 + $0x17] sm:$0x1] %vm631, %v1557
      %1573 = vst.msk [vmem:[%s340 + $0x1f] sm:$0x1] %vm631, %v1558
      %1574 = vst.msk [vmem:[%s340 + $0x27] sm:$0x1] %vm631, %v1559
      %1575 = vst.msk [vmem:[%s340 + $0x2f] sm:$0x1] %vm631, %v1560
      %1576 = vst.msk [vmem:[%s340 + $0x37] sm:$0x1] %vm631, %v1561
      %1577 = vst.msk [vmem:[%s340 + $0x3f] sm:$0x1] %vm631, %v1562
      %p1578 = scmp.lt.s32.totalorder %s22, 1
      %s1579 = scalar_select %p1578, %s22, 1
      %p1580 = scmp.lt.s32.totalorder %s23, 0
      %s1581 = scalar_select %p1580, %s23, 0
      %s1582 = smul.addr %s1579, 8
      %s1583 = sadd.s32 %s1581, %s1582
      %s1584 = smul.addr %s1583, 8
      %s1585 = scalar_lea.vmem %s7, %s1584
      // Predicated region
      $region49: #{quantizer_decoder_forward.1} parent=47 // pred_check
        %p1586 = pneg %p211
      $region50: #{quantizer_decoder_forward.1} parent=47 // pred_check_branch
        %1588 = sbr.rel (%p1586) target = $region52
      $region51: #{quantizer_decoder_forward.1} parent=47 // pred_region
        _
      $region52: #{quantizer_decoder_forward.1} parent=47 // pred_fallthru
        _
    $region48: #{quantizer_decoder_forward.1} parent=5 // pred_fallthru
      _
    %p1589 = scmp.le.s32.totalorder 2, %s13
    // Predicated region
    $region53: #{quantizer_decoder_forward.1} parent=5 // pred_check
      %p1590 = pneg %p1589
    $region54: #{quantizer_decoder_forward.1} parent=5 // pred_check_branch
      %1592 = sbr.rel (%p1590) target = $region56
    $region55: #{quantizer_decoder_forward.1} parent=5 // pred_region
      %s1593 = ssub.s32 %s13, 2
      // Predicated region
      $region57: #{quantizer_decoder_forward.1} parent=55 // pred_check
        %p1594 = pneg %p217
      $region58: #{quantizer_decoder_forward.1} parent=55 // pred_check_branch
        %1596 = sbr.rel (%p1594) target = $region60
      $region59: #{quantizer_decoder_forward.1} parent=55 // pred_region
        %p1597 = scmp.lt.s32.totalorder %s24, 1
        %s1598 = scalar_select %p1597, %s24, 1
        %p1599 = scmp.lt.s32.totalorder %s25, 0
        %s1600 = scalar_select %p1599, %s25, 0
        %s1601 = smul.addr %s1598, 8
        %s1602 = sadd.s32 %s1600, %s1601
        %s1603 = smul.addr %s1602, 8
        %s1604 = scalar_lea.vmem %s7, %s1603
      $region60: #{quantizer_decoder_forward.1} parent=55 // pred_fallthru
        _
    $region56: #{quantizer_decoder_forward.1} parent=5 // pred_fallthru
      _
  $region6: #{quantizer_decoder_forward.1} parent=0 // loop_footer
    %s17 = sadd.s32 1, %s13
  $region7: #{quantizer_decoder_forward.1} parent=0 // loop_footer_branch
    %12 = sbr.rel target = $region3
  $region8: #{quantizer_decoder_forward.1} parent=0 // loop_exit
    _

</llo_original>
